<compile_context>
chip_gen: v5e
topology: v5e:2x2
jax: 0.10.0
libtpu: 0.0.40
codegen_flags: <defaults>
</compile_context>

<pallas_src>
import jax
import jax.numpy as jnp
from jax.scipy.linalg import block_diag
from jax.experimental import pallas as pl
from jax.experimental.pallas import tpu as pltpu  # noqa: F401  (TPU backend)

# ---- small synthetic config (mirrors the shapes implied by __init__) ----
D_L, D_A, D_V = 8, 4, 4                 # config['input_dims']
DH_L, DH_A, DH_V = 8, 4, 4              # config['h_dims']
TOTAL_H = DH_L + DH_A + DH_V            # 16
MEM_DIM = 8                             # config['memsize']
WINDOW = 2                              # config['windowsize'] (cStar = prev||new)
ATT_IN = TOTAL_H * WINDOW               # 32
GAMMA_IN = ATT_IN + MEM_DIM             # 40
H_ATT1 = H_ATT2 = H_G1 = H_G2 = 16      # NN1/NN2/gamma1/gamma2 'shapes'
FINAL_OUT = TOTAL_H + MEM_DIM           # 24
T, N = 8, 4                             # seq length, batch
D_IN = D_L + D_A + D_V                  # 16


# ----------------------------- kernel -----------------------------
def mfn_kernel(x_ref,
               wih_ref, whh_ref, blstm_ref,
               a1w1_ref, a1b1_ref, a1w2_ref, a1b2_ref,
               fw1_ref, fb1_ref, fw2_ref, fb2_ref,
               out_ref):
    t_len, n, _ = x_ref.shape

    # Hoist all weight loads out of the unrolled time loop.
    wih = wih_ref[...]          # (D_IN, 4*TOTAL_H)  block-diag, gate order i|f|o|g
    whh = whh_ref[...]          # (TOTAL_H, 4*TOTAL_H)
    b_lstm = blstm_ref[...]     # (1, 4*TOTAL_H)
    a1w1 = a1w1_ref[...]        # (ATT_IN, H_ATT1)
    a1b1 = a1b1_ref[...]
    a1w2 = a1w2_ref[...]        # (H_ATT1, ATT_IN)
    a1b2 = a1b2_ref[...]
    fw1 = fw1_ref[...]          # (GAMMA_IN, H_ATT2+H_G1+H_G2) fused att2/g1/g2 fc1
    fb1 = fb1_ref[...]
    fw2 = fw2_ref[...]          # (H_ATT2+H_G1+H_G2, 3*MEM_DIM) block-diag fc2
    fb2 = fb2_ref[...]

    # vreg-resident recurrent state.
    h = jnp.zeros((n, TOTAL_H), jnp.float32)    # [h_l | h_a | h_v]
    c = jnp.zeros((n, TOTAL_H), jnp.float32)    # [c_l | c_a | c_v]
    mem = jnp.zeros((n, MEM_DIM), jnp.float32)

    for t in range(t_len):                      # fully unrolled (T static)
        x_t = x_ref[t]                          # (N, D_IN), cols [x_l|x_a|x_v]
        prev_c = c

        # Fused 3-modality LSTM cell: two MXU pushes, gate order i|f|o|g.
        gates = (jnp.dot(x_t, wih, preferred_element_type=jnp.float32)
                 + jnp.dot(h, whh, preferred_element_type=jnp.float32)
                 + b_lstm)                                       # (N, 4*TOTAL_H)
        sig = jax.nn.sigmoid(gates[:, :3 * TOTAL_H])             # one EUP slab
        i_g = sig[:, :TOTAL_H]
        f_g = sig[:, TOTAL_H:2 * TOTAL_H]
        o_g = sig[:, 2 * TOTAL_H:]
        g_g = jnp.tanh(gates[:, 3 * TOTAL_H:])                   # one tanh slab
        c = f_g * prev_c + i_g * g_g
        h = o_g * jnp.tanh(c)

        # cStar = [prev_cs, new_cs]  -> (N, ATT_IN)
        c_star = jnp.concatenate([prev_c, c], axis=1)

        # attention = softmax(att1_fc2(relu(att1_fc1(cStar))), dim=1)
        att_h = jnp.maximum(
            jnp.dot(c_star, a1w1, preferred_element_type=jnp.float32) + a1b1, 0.0)
        logits = jnp.dot(att_h, a1w2, preferred_element_type=jnp.float32) + a1b2
        logits = logits - jnp.max(logits, axis=1, keepdims=True)
        e = jnp.exp(logits)
        inv_den = pl.reciprocal(jnp.sum(e, axis=1, keepdims=True), approx=True)
        attended = (e * inv_den) * c_star

        # both = [attended, mem] feeds att2 / gamma1 / gamma2 (fused).
        both = jnp.concatenate([attended, mem], axis=1)          # (N, GAMMA_IN)
        hmid = jnp.maximum(
            jnp.dot(both, fw1, preferred_element_type=jnp.float32) + fb1, 0.0)
        fused = jnp.dot(hmid, fw2, preferred_element_type=jnp.float32) + fb2
        c_hat = jnp.tanh(fused[:, :MEM_DIM])                     # att2 branch
        gam = jax.nn.sigmoid(fused[:, MEM_DIM:])                 # gamma1|gamma2
        mem = gam[:, :MEM_DIM] * mem + gam[:, MEM_DIM:] * c_hat

    # last_hs = cat([h_l, h_a, h_v, mem], dim=1)  -- written once.
    out_ref[...] = jnp.concatenate([h, mem], axis=1).astype(out_ref.dtype)


# ------------------------ weight packing ------------------------
def pack_params(params):
    (wih_l, whh_l, b_l, wih_a, whh_a, b_a, wih_v, whh_v, b_v,
     a1w1, a1b1, a1w2, a1b2, a2w1, a2b1, a2w2, a2b2,
     g1w1, g1b1, g1w2, g1b2, g2w1, g2b1, g2w2, g2b2) = params

    def split4(m, dh):  # PyTorch gate order along columns: i, f, g, o
        return m[:, :dh], m[:, dh:2 * dh], m[:, 2 * dh:3 * dh], m[:, 3 * dh:]

    def fuse_w(w_l, w_a, w_v):
        il, fl, gl, ol = split4(w_l, DH_L)
        ia, fa, ga, oa = split4(w_a, DH_A)
        iv, fv, gv, ov = split4(w_v, DH_V)
        # reorder gate groups to i | f | o | g, block-diag across modalities
        return jnp.concatenate([
            block_diag(il, ia, iv),
            block_diag(fl, fa, fv),
            block_diag(ol, oa, ov),
            block_diag(gl, ga, gv)], axis=1)

    wih = fuse_w(wih_l, wih_a, wih_v)       # (D_IN, 4*TOTAL_H)
    whh = fuse_w(whh_l, whh_a, whh_v)       # (TOTAL_H, 4*TOTAL_H)

    bil, bfl, bgl, bol = split4(b_l, DH_L)
    bia, bfa, bga, boa = split4(b_a, DH_A)
    biv, bfv, bgv, bov = split4(b_v, DH_V)
    b_lstm = jnp.concatenate([bil, bia, biv, bfl, bfa, bfv,
                              bol, boa, bov, bgl, bga, bgv], axis=1)

    # Fuse att2_fc* with gamma1/gamma2: fc1 reads `both`, att2 rows for mem = 0.
    a2w1_pad = jnp.concatenate(
        [a2w1, jnp.zeros((MEM_DIM, a2w1.shape[1]), a2w1.dtype)], axis=0)
    fw1 = jnp.concatenate([a2w1_pad, g1w1, g2w1], axis=1)    # (GAMMA_IN, 48)
    fb1 = jnp.concatenate([a2b1, g1b1, g2b1], axis=1)        # (1, 48)
    fw2 = block_diag(a2w2, g1w2, g2w2)                       # (48, 3*MEM_DIM)
    fb2 = jnp.concatenate([a2b2, g1b2, g2b2], axis=1)        # (1, 3*MEM_DIM)

    return (wih, whh, b_lstm, a1w1, a1b1, a1w2, a1b2, fw1, fb1, fw2, fb2)


def mfn_forward(x, params):
    n = x.shape[1]
    packed = pack_params(params)
    return pl.pallas_call(
        mfn_kernel,
        out_shape=jax.ShapeDtypeStruct((n, FINAL_OUT), jnp.float32),
    )(x, *packed)


mfn_forward_jit = jax.jit(mfn_forward)


# ---------------- deterministic parameter init ----------------
def init_params(key):
    keys = iter(jax.random.split(key, 64))

    def unif(shape, fan):
        bound = 1.0 / (fan ** 0.5)
        return jax.random.uniform(next(keys), shape, jnp.float32, -bound, bound)

    def lstm(d_in, dh):
        wih = unif((d_in, 4 * dh), dh)                     # W_ih^T
        whh = unif((dh, 4 * dh), dh)                       # W_hh^T
        b = unif((1, 4 * dh), dh) + unif((1, 4 * dh), dh)  # b_ih + b_hh
        return [wih, whh, b]

    def linear(d_in, d_out):
        return [unif((d_in, d_out), d_in), unif((1, d_out), d_in)]

    p = []
    p += lstm(D_L, DH_L)
    p += lstm(D_A, DH_A)
    p += lstm(D_V, DH_V)
    for (din, dh, dout) in [(ATT_IN, H_ATT1, ATT_IN),    # att1
                            (ATT_IN, H_ATT2, MEM_DIM),   # att2
                            (GAMMA_IN, H_G1, MEM_DIM),   # gamma1
                            (GAMMA_IN, H_G2, MEM_DIM)]:  # gamma2
        p += linear(din, dh)
        p += linear(dh, dout)
    return p


# ---------------- plain-JAX reference (for validation) ----------------
def mfn_reference(x, params):
    (wih_l, whh_l, b_l, wih_a, whh_a, b_a, wih_v, whh_v, b_v,
     a1w1, a1b1, a1w2, a1b2, a2w1, a2b1, a2w2, a2b2,
     g1w1, g1b1, g1w2, g1b2, g2w1, g2b1, g2w2, g2b2) = params
    t, n, _ = x.shape
    h_l = jnp.zeros((n, DH_L)); h_a = jnp.zeros((n, DH_A)); h_v = jnp.zeros((n, DH_V))
    c_l = jnp.zeros((n, DH_L)); c_a = jnp.zeros((n, DH_A)); c_v = jnp.zeros((n, DH_V))
    mem = jnp.zeros((n, MEM_DIM))

    def cell(xi, h, c, wih, whh, b, dh):
        g = xi @ wih + h @ whh + b
        i = jax.nn.sigmoid(g[:, :dh]); f = jax.nn.sigmoid(g[:, dh:2 * dh])
        gg = jnp.tanh(g[:, 2 * dh:3 * dh]); o = jax.nn.sigmoid(g[:, 3 * dh:])
        cn = f * c + i * gg
        return o * jnp.tanh(cn), cn

    def mlp2(z, w1, b1, w2, b2):
        return jnp.maximum(z @ w1 + b1, 0.0) @ w2 + b2

    for i in range(t):
        x_t = x[i]
        pcl, pca, pcv = c_l, c_a, c_v
        h_l, c_l = cell(x_t[:, :D_L], h_l, pcl, wih_l, whh_l, b_l, DH_L)
        h_a, c_a = cell(x_t[:, D_L:D_L + D_A], h_a, pca, wih_a, whh_a, b_a, DH_A)
        h_v, c_v = cell(x_t[:, D_L + D_A:], h_v, pcv, wih_v, whh_v, b_v, DH_V)
        c_star = jnp.concatenate([pcl, pca, pcv, c_l, c_a, c_v], axis=1)
        att = jax.nn.softmax(mlp2(c_star, a1w1, a1b1, a1w2, a1b2), axis=1)
        attended = att * c_star
        c_hat = jnp.tanh(mlp2(attended, a2w1, a2b1, a2w2, a2b2))
        both = jnp.concatenate([attended, mem], axis=1)
        g1 = jax.nn.sigmoid(mlp2(both, g1w1, g1b1, g1w2, g1b2))
        g2 = jax.nn.sigmoid(mlp2(both, g2w1, g2b1, g2w2, g2b2))
        mem = g1 * mem + g2 * c_hat
    return jnp.concatenate([h_l, h_a, h_v, mem], axis=1)


if __name__ == "__main__":
    key = jax.random.PRNGKey(0)
    k_x, k_p = jax.random.split(key)
    x = jax.random.normal(k_x, (T, N, D_IN), jnp.float32)
    params = init_params(k_p)

    out = mfn_forward_jit(x, params)
    out = jax.block_until_ready(out)

    ref = mfn_reference(x, params)
    assert out.shape == (N, FINAL_OUT)
    # approx-reciprocal in the softmax denominator -> slightly looser tolerance
    assert jnp.allclose(out, ref, rtol=5e-3, atol=5e-3), (
        f"max abs err {jnp.max(jnp.abs(out - ref))}")
    print("KERNEL_OK")
</pallas_src>

<mosaic_0001>
module attributes {stable_mosaic.version = 11 : i64} {
  func.func @mfn_kernel(%arg0: memref<8x4x16xf32, #tpu.memory_space<vmem>>, %arg1: memref<16x64xf32, #tpu.memory_space<vmem>>, %arg2: memref<16x64xf32, #tpu.memory_space<vmem>>, %arg3: memref<1x64xf32, #tpu.memory_space<vmem>>, %arg4: memref<32x16xf32, #tpu.memory_space<vmem>>, %arg5: memref<1x16xf32, #tpu.memory_space<vmem>>, %arg6: memref<16x32xf32, #tpu.memory_space<vmem>>, %arg7: memref<1x32xf32, #tpu.memory_space<vmem>>, %arg8: memref<40x48xf32, #tpu.memory_space<vmem>>, %arg9: memref<1x48xf32, #tpu.memory_space<vmem>>, %arg10: memref<48x24xf32, #tpu.memory_space<vmem>>, %arg11: memref<1x24xf32, #tpu.memory_space<vmem>>, %arg12: memref<4x24xf32, #tpu.memory_space<vmem>>) attributes {dimension_semantics = [], scalar_prefetch = 0 : i64, scratch_operands = 0 : i64, tpu.core_type = #tpu.core_type<tc>} {
    %c0 = arith.constant 0 : index
    %c0_0 = arith.constant 0 : index
    %0 = vector.load %arg1[%c0, %c0_0] : memref<16x64xf32, #tpu.memory_space<vmem>>, vector<16x64xf32>
    %c0_1 = arith.constant 0 : index
    %c0_2 = arith.constant 0 : index
    %1 = vector.load %arg2[%c0_1, %c0_2] : memref<16x64xf32, #tpu.memory_space<vmem>>, vector<16x64xf32>
    %c0_3 = arith.constant 0 : index
    %c0_4 = arith.constant 0 : index
    %2 = vector.load %arg3[%c0_3, %c0_4] : memref<1x64xf32, #tpu.memory_space<vmem>>, vector<1x64xf32>
    %c0_5 = arith.constant 0 : index
    %c0_6 = arith.constant 0 : index
    %3 = vector.load %arg4[%c0_5, %c0_6] : memref<32x16xf32, #tpu.memory_space<vmem>>, vector<32x16xf32>
    %c0_7 = arith.constant 0 : index
    %c0_8 = arith.constant 0 : index
    %4 = vector.load %arg5[%c0_7, %c0_8] : memref<1x16xf32, #tpu.memory_space<vmem>>, vector<1x16xf32>
    %c0_9 = arith.constant 0 : index
    %c0_10 = arith.constant 0 : index
    %5 = vector.load %arg6[%c0_9, %c0_10] : memref<16x32xf32, #tpu.memory_space<vmem>>, vector<16x32xf32>
    %c0_11 = arith.constant 0 : index
    %c0_12 = arith.constant 0 : index
    %6 = vector.load %arg7[%c0_11, %c0_12] : memref<1x32xf32, #tpu.memory_space<vmem>>, vector<1x32xf32>
    %c0_13 = arith.constant 0 : index
    %c0_14 = arith.constant 0 : index
    %7 = vector.load %arg8[%c0_13, %c0_14] : memref<40x48xf32, #tpu.memory_space<vmem>>, vector<40x48xf32>
    %c0_15 = arith.constant 0 : index
    %c0_16 = arith.constant 0 : index
    %8 = vector.load %arg9[%c0_15, %c0_16] : memref<1x48xf32, #tpu.memory_space<vmem>>, vector<1x48xf32>
    %c0_17 = arith.constant 0 : index
    %c0_18 = arith.constant 0 : index
    %9 = vector.load %arg10[%c0_17, %c0_18] : memref<48x24xf32, #tpu.memory_space<vmem>>, vector<48x24xf32>
    %c0_19 = arith.constant 0 : index
    %c0_20 = arith.constant 0 : index
    %10 = vector.load %arg11[%c0_19, %c0_20] : memref<1x24xf32, #tpu.memory_space<vmem>>, vector<1x24xf32>
    %cst = arith.constant 0.000000e+00 : f32
    %11 = vector.broadcast %cst : f32 to vector<4x16xf32>
    %cst_21 = arith.constant 0.000000e+00 : f32
    %12 = vector.broadcast %cst_21 : f32 to vector<4x16xf32>
    %cst_22 = arith.constant 0.000000e+00 : f32
    %13 = vector.broadcast %cst_22 : f32 to vector<4x8xf32>
    %c0_23 = arith.constant 0 : index
    %c0_24 = arith.constant 0 : index
    %c0_25 = arith.constant 0 : index
    %14 = vector.load %arg0[%c0_23, %c0_24, %c0_25] : memref<8x4x16xf32, #tpu.memory_space<vmem>>, vector<1x4x16xf32>
    %15 = vector.shape_cast %14 : vector<1x4x16xf32> to vector<4x16xf32>
    %cst_26 = arith.constant dense<0.000000e+00> : vector<4x64xf32>
    %16 = tpu.matmul %15, %0, %cst_26 {dimension_numbers = #tpu.dot_dimension_numbers<[1], [0], [0], [1], [0, 0, 1, 1], [], []>} : vector<4x16xf32>, vector<16x64xf32>, vector<4x64xf32> -> vector<4x64xf32>
    %cst_27 = arith.constant dense<0.000000e+00> : vector<4x64xf32>
    %17 = tpu.matmul %11, %1, %cst_27 {dimension_numbers = #tpu.dot_dimension_numbers<[1], [0], [0], [1], [0, 0, 1, 1], [], []>} : vector<4x16xf32>, vector<16x64xf32>, vector<4x64xf32> -> vector<4x64xf32>
    %18 = arith.addf %16, %17 : vector<4x64xf32>
    %19 = vector.broadcast %2 : vector<1x64xf32> to vector<4x64xf32>
    %20 = arith.addf %18, %19 : vector<4x64xf32>
    %21 = vector.extract_strided_slice %20 {offsets = [0, 0], sizes = [4, 48], strides = [1, 1]} : vector<4x64xf32> to vector<4x48xf32>
    %22 = arith.negf %21 : vector<4x48xf32>
    %23 = math.exp %22 : vector<4x48xf32>
    %cst_28 = arith.constant 1.000000e+00 : f32
    %24 = vector.broadcast %cst_28 : f32 to vector<4x48xf32>
    %25 = arith.addf %24, %23 : vector<4x48xf32>
    %26 = arith.divf %24, %25 : vector<4x48xf32>
    %27 = vector.extract_strided_slice %26 {offsets = [0, 0], sizes = [4, 16], strides = [1, 1]} : vector<4x48xf32> to vector<4x16xf32>
    %28 = vector.extract_strided_slice %26 {offsets = [0, 16], sizes = [4, 16], strides = [1, 1]} : vector<4x48xf32> to vector<4x16xf32>
    %29 = vector.extract_strided_slice %26 {offsets = [0, 32], sizes = [4, 16], strides = [1, 1]} : vector<4x48xf32> to vector<4x16xf32>
    %30 = vector.extract_strided_slice %20 {offsets = [0, 48], sizes = [4, 16], strides = [1, 1]} : vector<4x64xf32> to vector<4x16xf32>
    %31 = math.tanh %30 : vector<4x16xf32>
    %32 = arith.mulf %28, %12 : vector<4x16xf32>
    %33 = arith.mulf %27, %31 : vector<4x16xf32>
    %34 = arith.addf %32, %33 : vector<4x16xf32>
    %35 = math.tanh %34 : vector<4x16xf32>
    %36 = arith.mulf %29, %35 : vector<4x16xf32>
    %37 = tpu.concatenate %12, %34 in 1 : vector<4x16xf32>, vector<4x16xf32> -> vector<4x32xf32>
    %cst_29 = arith.constant dense<0.000000e+00> : vector<4x16xf32>
    %38 = tpu.matmul %37, %3, %cst_29 {dimension_numbers = #tpu.dot_dimension_numbers<[1], [0], [0], [1], [0, 0, 1, 1], [], []>} : vector<4x32xf32>, vector<32x16xf32>, vector<4x16xf32> -> vector<4x16xf32>
    %39 = vector.broadcast %4 : vector<1x16xf32> to vector<4x16xf32>
    %40 = arith.addf %38, %39 : vector<4x16xf32>
    %cst_30 = arith.constant 0.000000e+00 : f32
    %41 = vector.broadcast %cst_30 : f32 to vector<4x16xf32>
    %42 = arith.maximumf %40, %41 : vector<4x16xf32>
    %cst_31 = arith.constant dense<0.000000e+00> : vector<4x32xf32>
    %43 = tpu.matmul %42, %5, %cst_31 {dimension_numbers = #tpu.dot_dimension_numbers<[1], [0], [0], [1], [0, 0, 1, 1], [], []>} : vector<4x16xf32>, vector<16x32xf32>, vector<4x32xf32> -> vector<4x32xf32>
    %44 = vector.broadcast %6 : vector<1x32xf32> to vector<4x32xf32>
    %45 = arith.addf %43, %44 : vector<4x32xf32>
    %cst_32 = arith.constant dense<0xFF800000> : vector<4xf32>
    %46 = vector.multi_reduction <maximumf>, %45, %cst_32 [1] : vector<4x32xf32> to vector<4xf32>
    %47 = vector.shape_cast %46 : vector<4xf32> to vector<4x1xf32>
    %48 = vector.broadcast %47 : vector<4x1xf32> to vector<4x32xf32>
    %49 = arith.subf %45, %48 : vector<4x32xf32>
    %50 = math.exp %49 : vector<4x32xf32>
    %cst_33 = arith.constant dense<0.000000e+00> : vector<4xf32>
    %51 = vector.multi_reduction <add>, %50, %cst_33 [1] : vector<4x32xf32> to vector<4xf32>
    %52 = vector.shape_cast %51 : vector<4xf32> to vector<4x1xf32>
    %53 = tpu.reciprocal %52 {approx = true} : vector<4x1xf32> -> vector<4x1xf32>
    %54 = vector.broadcast %53 : vector<4x1xf32> to vector<4x32xf32>
    %55 = arith.mulf %50, %54 : vector<4x32xf32>
    %56 = arith.mulf %55, %37 : vector<4x32xf32>
    %57 = tpu.concatenate %56, %13 in 1 : vector<4x32xf32>, vector<4x8xf32> -> vector<4x40xf32>
    %cst_34 = arith.constant dense<0.000000e+00> : vector<4x48xf32>
    %58 = tpu.matmul %57, %7, %cst_34 {dimension_numbers = #tpu.dot_dimension_numbers<[1], [0], [0], [1], [0, 0, 1, 1], [], []>} : vector<4x40xf32>, vector<40x48xf32>, vector<4x48xf32> -> vector<4x48xf32>
    %59 = vector.broadcast %8 : vector<1x48xf32> to vector<4x48xf32>
    %60 = arith.addf %58, %59 : vector<4x48xf32>
    %cst_35 = arith.constant 0.000000e+00 : f32
    %61 = vector.broadcast %cst_35 : f32 to vector<4x48xf32>
    %62 = arith.maximumf %60, %61 : vector<4x48xf32>
    %cst_36 = arith.constant dense<0.000000e+00> : vector<4x24xf32>
    %63 = tpu.matmul %62, %9, %cst_36 {dimension_numbers = #tpu.dot_dimension_numbers<[1], [0], [0], [1], [0, 0, 1, 1], [], []>} : vector<4x48xf32>, vector<48x24xf32>, vector<4x24xf32> -> vector<4x24xf32>
    %64 = vector.broadcast %10 : vector<1x24xf32> to vector<4x24xf32>
    %65 = arith.addf %63, %64 : vector<4x24xf32>
    %66 = vector.extract_strided_slice %65 {offsets = [0, 0], sizes = [4, 8], strides = [1, 1]} : vector<4x24xf32> to vector<4x8xf32>
    %67 = math.tanh %66 : vector<4x8xf32>
    %68 = vector.extract_strided_slice %65 {offsets = [0, 8], sizes = [4, 16], strides = [1, 1]} : vector<4x24xf32> to vector<4x16xf32>
    %69 = arith.negf %68 : vector<4x16xf32>
    %70 = math.exp %69 : vector<4x16xf32>
    %cst_37 = arith.constant 1.000000e+00 : f32
    %71 = vector.broadcast %cst_37 : f32 to vector<4x16xf32>
    %72 = arith.addf %71, %70 : vector<4x16xf32>
    %73 = arith.divf %71, %72 : vector<4x16xf32>
    %74 = vector.extract_strided_slice %73 {offsets = [0, 0], sizes = [4, 8], strides = [1, 1]} : vector<4x16xf32> to vector<4x8xf32>
    %75 = arith.mulf %74, %13 : vector<4x8xf32>
    %76 = vector.extract_strided_slice %73 {offsets = [0, 8], sizes = [4, 8], strides = [1, 1]} : vector<4x16xf32> to vector<4x8xf32>
    %77 = arith.mulf %76, %67 : vector<4x8xf32>
    %78 = arith.addf %75, %77 : vector<4x8xf32>
    %c1 = arith.constant 1 : index
    %c0_38 = arith.constant 0 : index
    %c0_39 = arith.constant 0 : index
    %79 = vector.load %arg0[%c1, %c0_38, %c0_39] : memref<8x4x16xf32, #tpu.memory_space<vmem>>, vector<1x4x16xf32>
    %80 = vector.shape_cast %79 : vector<1x4x16xf32> to vector<4x16xf32>
    %cst_40 = arith.constant dense<0.000000e+00> : vector<4x64xf32>
    %81 = tpu.matmul %80, %0, %cst_40 {dimension_numbers = #tpu.dot_dimension_numbers<[1], [0], [0], [1], [0, 0, 1, 1], [], []>} : vector<4x16xf32>, vector<16x64xf32>, vector<4x64xf32> -> vector<4x64xf32>
    %cst_41 = arith.constant dense<0.000000e+00> : vector<4x64xf32>
    %82 = tpu.matmul %36, %1, %cst_41 {dimension_numbers = #tpu.dot_dimension_numbers<[1], [0], [0], [1], [0, 0, 1, 1], [], []>} : vector<4x16xf32>, vector<16x64xf32>, vector<4x64xf32> -> vector<4x64xf32>
    %83 = arith.addf %81, %82 : vector<4x64xf32>
    %84 = vector.broadcast %2 : vector<1x64xf32> to vector<4x64xf32>
    %85 = arith.addf %83, %84 : vector<4x64xf32>
    %86 = vector.extract_strided_slice %85 {offsets = [0, 0], sizes = [4, 48], strides = [1, 1]} : vector<4x64xf32> to vector<4x48xf32>
    %87 = arith.negf %86 : vector<4x48xf32>
    %88 = math.exp %87 : vector<4x48xf32>
    %cst_42 = arith.constant 1.000000e+00 : f32
    %89 = vector.broadcast %cst_42 : f32 to vector<4x48xf32>
    %90 = arith.addf %89, %88 : vector<4x48xf32>
    %91 = arith.divf %89, %90 : vector<4x48xf32>
    %92 = vector.extract_strided_slice %91 {offsets = [0, 0], sizes = [4, 16], strides = [1, 1]} : vector<4x48xf32> to vector<4x16xf32>
    %93 = vector.extract_strided_slice %91 {offsets = [0, 16], sizes = [4, 16], strides = [1, 1]} : vector<4x48xf32> to vector<4x16xf32>
    %94 = vector.extract_strided_slice %91 {offsets = [0, 32], sizes = [4, 16], strides = [1, 1]} : vector<4x48xf32> to vector<4x16xf32>
    %95 = vector.extract_strided_slice %85 {offsets = [0, 48], sizes = [4, 16], strides = [1, 1]} : vector<4x64xf32> to vector<4x16xf32>
    %96 = math.tanh %95 : vector<4x16xf32>
    %97 = arith.mulf %93, %34 : vector<4x16xf32>
    %98 = arith.mulf %92, %96 : vector<4x16xf32>
    %99 = arith.addf %97, %98 : vector<4x16xf32>
    %100 = math.tanh %99 : vector<4x16xf32>
    %101 = arith.mulf %94, %100 : vector<4x16xf32>
    %102 = tpu.concatenate %34, %99 in 1 : vector<4x16xf32>, vector<4x16xf32> -> vector<4x32xf32>
    %cst_43 = arith.constant dense<0.000000e+00> : vector<4x16xf32>
    %103 = tpu.matmul %102, %3, %cst_43 {dimension_numbers = #tpu.dot_dimension_numbers<[1], [0], [0], [1], [0, 0, 1, 1], [], []>} : vector<4x32xf32>, vector<32x16xf32>, vector<4x16xf32> -> vector<4x16xf32>
    %104 = vector.broadcast %4 : vector<1x16xf32> to vector<4x16xf32>
    %105 = arith.addf %103, %104 : vector<4x16xf32>
    %cst_44 = arith.constant 0.000000e+00 : f32
    %106 = vector.broadcast %cst_44 : f32 to vector<4x16xf32>
    %107 = arith.maximumf %105, %106 : vector<4x16xf32>
    %cst_45 = arith.constant dense<0.000000e+00> : vector<4x32xf32>
    %108 = tpu.matmul %107, %5, %cst_45 {dimension_numbers = #tpu.dot_dimension_numbers<[1], [0], [0], [1], [0, 0, 1, 1], [], []>} : vector<4x16xf32>, vector<16x32xf32>, vector<4x32xf32> -> vector<4x32xf32>
    %109 = vector.broadcast %6 : vector<1x32xf32> to vector<4x32xf32>
    %110 = arith.addf %108, %109 : vector<4x32xf32>
    %cst_46 = arith.constant dense<0xFF800000> : vector<4xf32>
    %111 = vector.multi_reduction <maximumf>, %110, %cst_46 [1] : vector<4x32xf32> to vector<4xf32>
    %112 = vector.shape_cast %111 : vector<4xf32> to vector<4x1xf32>
    %113 = vector.broadcast %112 : vector<4x1xf32> to vector<4x32xf32>
    %114 = arith.subf %110, %113 : vector<4x32xf32>
    %115 = math.exp %114 : vector<4x32xf32>
    %cst_47 = arith.constant dense<0.000000e+00> : vector<4xf32>
    %116 = vector.multi_reduction <add>, %115, %cst_47 [1] : vector<4x32xf32> to vector<4xf32>
    %117 = vector.shape_cast %116 : vector<4xf32> to vector<4x1xf32>
    %118 = tpu.reciprocal %117 {approx = true} : vector<4x1xf32> -> vector<4x1xf32>
    %119 = vector.broadcast %118 : vector<4x1xf32> to vector<4x32xf32>
    %120 = arith.mulf %115, %119 : vector<4x32xf32>
    %121 = arith.mulf %120, %102 : vector<4x32xf32>
    %122 = tpu.concatenate %121, %78 in 1 : vector<4x32xf32>, vector<4x8xf32> -> vector<4x40xf32>
    %cst_48 = arith.constant dense<0.000000e+00> : vector<4x48xf32>
    %123 = tpu.matmul %122, %7, %cst_48 {dimension_numbers = #tpu.dot_dimension_numbers<[1], [0], [0], [1], [0, 0, 1, 1], [], []>} : vector<4x40xf32>, vector<40x48xf32>, vector<4x48xf32> -> vector<4x48xf32>
    %124 = vector.broadcast %8 : vector<1x48xf32> to vector<4x48xf32>
    %125 = arith.addf %123, %124 : vector<4x48xf32>
    %cst_49 = arith.constant 0.000000e+00 : f32
    %126 = vector.broadcast %cst_49 : f32 to vector<4x48xf32>
    %127 = arith.maximumf %125, %126 : vector<4x48xf32>
    %cst_50 = arith.constant dense<0.000000e+00> : vector<4x24xf32>
    %128 = tpu.matmul %127, %9, %cst_50 {dimension_numbers = #tpu.dot_dimension_numbers<[1], [0], [0], [1], [0, 0, 1, 1], [], []>} : vector<4x48xf32>, vector<48x24xf32>, vector<4x24xf32> -> vector<4x24xf32>
    %129 = vector.broadcast %10 : vector<1x24xf32> to vector<4x24xf32>
    %130 = arith.addf %128, %129 : vector<4x24xf32>
    %131 = vector.extract_strided_slice %130 {offsets = [0, 0], sizes = [4, 8], strides = [1, 1]} : vector<4x24xf32> to vector<4x8xf32>
    %132 = math.tanh %131 : vector<4x8xf32>
    %133 = vector.extract_strided_slice %130 {offsets = [0, 8], sizes = [4, 16], strides = [1, 1]} : vector<4x24xf32> to vector<4x16xf32>
    %134 = arith.negf %133 : vector<4x16xf32>
    %135 = math.exp %134 : vector<4x16xf32>
    %cst_51 = arith.constant 1.000000e+00 : f32
    %136 = vector.broadcast %cst_51 : f32 to vector<4x16xf32>
    %137 = arith.addf %136, %135 : vector<4x16xf32>
    %138 = arith.divf %136, %137 : vector<4x16xf32>
    %139 = vector.extract_strided_slice %138 {offsets = [0, 0], sizes = [4, 8], strides = [1, 1]} : vector<4x16xf32> to vector<4x8xf32>
    %140 = arith.mulf %139, %78 : vector<4x8xf32>
    %141 = vector.extract_strided_slice %138 {offsets = [0, 8], sizes = [4, 8], strides = [1, 1]} : vector<4x16xf32> to vector<4x8xf32>
    %142 = arith.mulf %141, %132 : vector<4x8xf32>
    %143 = arith.addf %140, %142 : vector<4x8xf32>
    %c2 = arith.constant 2 : index
    %c0_52 = arith.constant 0 : index
    %c0_53 = arith.constant 0 : index
    %144 = vector.load %arg0[%c2, %c0_52, %c0_53] : memref<8x4x16xf32, #tpu.memory_space<vmem>>, vector<1x4x16xf32>
    %145 = vector.shape_cast %144 : vector<1x4x16xf32> to vector<4x16xf32>
    %cst_54 = arith.constant dense<0.000000e+00> : vector<4x64xf32>
    %146 = tpu.matmul %145, %0, %cst_54 {dimension_numbers = #tpu.dot_dimension_numbers<[1], [0], [0], [1], [0, 0, 1, 1], [], []>} : vector<4x16xf32>, vector<16x64xf32>, vector<4x64xf32> -> vector<4x64xf32>
    %cst_55 = arith.constant dense<0.000000e+00> : vector<4x64xf32>
    %147 = tpu.matmul %101, %1, %cst_55 {dimension_numbers = #tpu.dot_dimension_numbers<[1], [0], [0], [1], [0, 0, 1, 1], [], []>} : vector<4x16xf32>, vector<16x64xf32>, vector<4x64xf32> -> vector<4x64xf32>
    %148 = arith.addf %146, %147 : vector<4x64xf32>
    %149 = vector.broadcast %2 : vector<1x64xf32> to vector<4x64xf32>
    %150 = arith.addf %148, %149 : vector<4x64xf32>
    %151 = vector.extract_strided_slice %150 {offsets = [0, 0], sizes = [4, 48], strides = [1, 1]} : vector<4x64xf32> to vector<4x48xf32>
    %152 = arith.negf %151 : vector<4x48xf32>
    %153 = math.exp %152 : vector<4x48xf32>
    %cst_56 = arith.constant 1.000000e+00 : f32
    %154 = vector.broadcast %cst_56 : f32 to vector<4x48xf32>
    %155 = arith.addf %154, %153 : vector<4x48xf32>
    %156 = arith.divf %154, %155 : vector<4x48xf32>
    %157 = vector.extract_strided_slice %156 {offsets = [0, 0], sizes = [4, 16], strides = [1, 1]} : vector<4x48xf32> to vector<4x16xf32>
    %158 = vector.extract_strided_slice %156 {offsets = [0, 16], sizes = [4, 16], strides = [1, 1]} : vector<4x48xf32> to vector<4x16xf32>
    %159 = vector.extract_strided_slice %156 {offsets = [0, 32], sizes = [4, 16], strides = [1, 1]} : vector<4x48xf32> to vector<4x16xf32>
    %160 = vector.extract_strided_slice %150 {offsets = [0, 48], sizes = [4, 16], strides = [1, 1]} : vector<4x64xf32> to vector<4x16xf32>
    %161 = math.tanh %160 : vector<4x16xf32>
    %162 = arith.mulf %158, %99 : vector<4x16xf32>
    %163 = arith.mulf %157, %161 : vector<4x16xf32>
    %164 = arith.addf %162, %163 : vector<4x16xf32>
    %165 = math.tanh %164 : vector<4x16xf32>
    %166 = arith.mulf %159, %165 : vector<4x16xf32>
    %167 = tpu.concatenate %99, %164 in 1 : vector<4x16xf32>, vector<4x16xf32> -> vector<4x32xf32>
    %cst_57 = arith.constant dense<0.000000e+00> : vector<4x16xf32>
    %168 = tpu.matmul %167, %3, %cst_57 {dimension_numbers = #tpu.dot_dimension_numbers<[1], [0], [0], [1], [0, 0, 1, 1], [], []>} : vector<4x32xf32>, vector<32x16xf32>, vector<4x16xf32> -> vector<4x16xf32>
    %169 = vector.broadcast %4 : vector<1x16xf32> to vector<4x16xf32>
    %170 = arith.addf %168, %169 : vector<4x16xf32>
    %cst_58 = arith.constant 0.000000e+00 : f32
    %171 = vector.broadcast %cst_58 : f32 to vector<4x16xf32>
    %172 = arith.maximumf %170, %171 : vector<4x16xf32>
    %cst_59 = arith.constant dense<0.000000e+00> : vector<4x32xf32>
    %173 = tpu.matmul %172, %5, %cst_59 {dimension_numbers = #tpu.dot_dimension_numbers<[1], [0], [0], [1], [0, 0, 1, 1], [], []>} : vector<4x16xf32>, vector<16x32xf32>, vector<4x32xf32> -> vector<4x32xf32>
    %174 = vector.broadcast %6 : vector<1x32xf32> to vector<4x32xf32>
    %175 = arith.addf %173, %174 : vector<4x32xf32>
    %cst_60 = arith.constant dense<0xFF800000> : vector<4xf32>
    %176 = vector.multi_reduction <maximumf>, %175, %cst_60 [1] : vector<4x32xf32> to vector<4xf32>
    %177 = vector.shape_cast %176 : vector<4xf32> to vector<4x1xf32>
    %178 = vector.broadcast %177 : vector<4x1xf32> to vector<4x32xf32>
    %179 = arith.subf %175, %178 : vector<4x32xf32>
    %180 = math.exp %179 : vector<4x32xf32>
    %cst_61 = arith.constant dense<0.000000e+00> : vector<4xf32>
    %181 = vector.multi_reduction <add>, %180, %cst_61 [1] : vector<4x32xf32> to vector<4xf32>
    %182 = vector.shape_cast %181 : vector<4xf32> to vector<4x1xf32>
    %183 = tpu.reciprocal %182 {approx = true} : vector<4x1xf32> -> vector<4x1xf32>
    %184 = vector.broadcast %183 : vector<4x1xf32> to vector<4x32xf32>
    %185 = arith.mulf %180, %184 : vector<4x32xf32>
    %186 = arith.mulf %185, %167 : vector<4x32xf32>
    %187 = tpu.concatenate %186, %143 in 1 : vector<4x32xf32>, vector<4x8xf32> -> vector<4x40xf32>
    %cst_62 = arith.constant dense<0.000000e+00> : vector<4x48xf32>
    %188 = tpu.matmul %187, %7, %cst_62 {dimension_numbers = #tpu.dot_dimension_numbers<[1], [0], [0], [1], [0, 0, 1, 1], [], []>} : vector<4x40xf32>, vector<40x48xf32>, vector<4x48xf32> -> vector<4x48xf32>
    %189 = vector.broadcast %8 : vector<1x48xf32> to vector<4x48xf32>
    %190 = arith.addf %188, %189 : vector<4x48xf32>
    %cst_63 = arith.constant 0.000000e+00 : f32
    %191 = vector.broadcast %cst_63 : f32 to vector<4x48xf32>
    %192 = arith.maximumf %190, %191 : vector<4x48xf32>
    %cst_64 = arith.constant dense<0.000000e+00> : vector<4x24xf32>
    %193 = tpu.matmul %192, %9, %cst_64 {dimension_numbers = #tpu.dot_dimension_numbers<[1], [0], [0], [1], [0, 0, 1, 1], [], []>} : vector<4x48xf32>, vector<48x24xf32>, vector<4x24xf32> -> vector<4x24xf32>
    %194 = vector.broadcast %10 : vector<1x24xf32> to vector<4x24xf32>
    %195 = arith.addf %193, %194 : vector<4x24xf32>
    %196 = vector.extract_strided_slice %195 {offsets = [0, 0], sizes = [4, 8], strides = [1, 1]} : vector<4x24xf32> to vector<4x8xf32>
    %197 = math.tanh %196 : vector<4x8xf32>
    %198 = vector.extract_strided_slice %195 {offsets = [0, 8], sizes = [4, 16], strides = [1, 1]} : vector<4x24xf32> to vector<4x16xf32>
    %199 = arith.negf %198 : vector<4x16xf32>
    %200 = math.exp %199 : vector<4x16xf32>
    %cst_65 = arith.constant 1.000000e+00 : f32
    %201 = vector.broadcast %cst_65 : f32 to vector<4x16xf32>
    %202 = arith.addf %201, %200 : vector<4x16xf32>
    %203 = arith.divf %201, %202 : vector<4x16xf32>
    %204 = vector.extract_strided_slice %203 {offsets = [0, 0], sizes = [4, 8], strides = [1, 1]} : vector<4x16xf32> to vector<4x8xf32>
    %205 = arith.mulf %204, %143 : vector<4x8xf32>
    %206 = vector.extract_strided_slice %203 {offsets = [0, 8], sizes = [4, 8], strides = [1, 1]} : vector<4x16xf32> to vector<4x8xf32>
    %207 = arith.mulf %206, %197 : vector<4x8xf32>
    %208 = arith.addf %205, %207 : vector<4x8xf32>
    %c3 = arith.constant 3 : index
    %c0_66 = arith.constant 0 : index
    %c0_67 = arith.constant 0 : index
    %209 = vector.load %arg0[%c3, %c0_66, %c0_67] : memref<8x4x16xf32, #tpu.memory_space<vmem>>, vector<1x4x16xf32>
    %210 = vector.shape_cast %209 : vector<1x4x16xf32> to vector<4x16xf32>
    %cst_68 = arith.constant dense<0.000000e+00> : vector<4x64xf32>
    %211 = tpu.matmul %210, %0, %cst_68 {dimension_numbers = #tpu.dot_dimension_numbers<[1], [0], [0], [1], [0, 0, 1, 1], [], []>} : vector<4x16xf32>, vector<16x64xf32>, vector<4x64xf32> -> vector<4x64xf32>
    %cst_69 = arith.constant dense<0.000000e+00> : vector<4x64xf32>
    %212 = tpu.matmul %166, %1, %cst_69 {dimension_numbers = #tpu.dot_dimension_numbers<[1], [0], [0], [1], [0, 0, 1, 1], [], []>} : vector<4x16xf32>, vector<16x64xf32>, vector<4x64xf32> -> vector<4x64xf32>
    %213 = arith.addf %211, %212 : vector<4x64xf32>
    %214 = vector.broadcast %2 : vector<1x64xf32> to vector<4x64xf32>
    %215 = arith.addf %213, %214 : vector<4x64xf32>
    %216 = vector.extract_strided_slice %215 {offsets = [0, 0], sizes = [4, 48], strides = [1, 1]} : vector<4x64xf32> to vector<4x48xf32>
    %217 = arith.negf %216 : vector<4x48xf32>
    %218 = math.exp %217 : vector<4x48xf32>
    %cst_70 = arith.constant 1.000000e+00 : f32
    %219 = vector.broadcast %cst_70 : f32 to vector<4x48xf32>
    %220 = arith.addf %219, %218 : vector<4x48xf32>
    %221 = arith.divf %219, %220 : vector<4x48xf32>
    %222 = vector.extract_strided_slice %221 {offsets = [0, 0], sizes = [4, 16], strides = [1, 1]} : vector<4x48xf32> to vector<4x16xf32>
    %223 = vector.extract_strided_slice %221 {offsets = [0, 16], sizes = [4, 16], strides = [1, 1]} : vector<4x48xf32> to vector<4x16xf32>
    %224 = vector.extract_strided_slice %221 {offsets = [0, 32], sizes = [4, 16], strides = [1, 1]} : vector<4x48xf32> to vector<4x16xf32>
    %225 = vector.extract_strided_slice %215 {offsets = [0, 48], sizes = [4, 16], strides = [1, 1]} : vector<4x64xf32> to vector<4x16xf32>
    %226 = math.tanh %225 : vector<4x16xf32>
    %227 = arith.mulf %223, %164 : vector<4x16xf32>
    %228 = arith.mulf %222, %226 : vector<4x16xf32>
    %229 = arith.addf %227, %228 : vector<4x16xf32>
    %230 = math.tanh %229 : vector<4x16xf32>
    %231 = arith.mulf %224, %230 : vector<4x16xf32>
    %232 = tpu.concatenate %164, %229 in 1 : vector<4x16xf32>, vector<4x16xf32> -> vector<4x32xf32>
    %cst_71 = arith.constant dense<0.000000e+00> : vector<4x16xf32>
    %233 = tpu.matmul %232, %3, %cst_71 {dimension_numbers = #tpu.dot_dimension_numbers<[1], [0], [0], [1], [0, 0, 1, 1], [], []>} : vector<4x32xf32>, vector<32x16xf32>, vector<4x16xf32> -> vector<4x16xf32>
    %234 = vector.broadcast %4 : vector<1x16xf32> to vector<4x16xf32>
    %235 = arith.addf %233, %234 : vector<4x16xf32>
    %cst_72 = arith.constant 0.000000e+00 : f32
    %236 = vector.broadcast %cst_72 : f32 to vector<4x16xf32>
    %237 = arith.maximumf %235, %236 : vector<4x16xf32>
    %cst_73 = arith.constant dense<0.000000e+00> : vector<4x32xf32>
    %238 = tpu.matmul %237, %5, %cst_73 {dimension_numbers = #tpu.dot_dimension_numbers<[1], [0], [0], [1], [0, 0, 1, 1], [], []>} : vector<4x16xf32>, vector<16x32xf32>, vector<4x32xf32> -> vector<4x32xf32>
    %239 = vector.broadcast %6 : vector<1x32xf32> to vector<4x32xf32>
    %240 = arith.addf %238, %239 : vector<4x32xf32>
    %cst_74 = arith.constant dense<0xFF800000> : vector<4xf32>
    %241 = vector.multi_reduction <maximumf>, %240, %cst_74 [1] : vector<4x32xf32> to vector<4xf32>
    %242 = vector.shape_cast %241 : vector<4xf32> to vector<4x1xf32>
    %243 = vector.broadcast %242 : vector<4x1xf32> to vector<4x32xf32>
    %244 = arith.subf %240, %243 : vector<4x32xf32>
    %245 = math.exp %244 : vector<4x32xf32>
    %cst_75 = arith.constant dense<0.000000e+00> : vector<4xf32>
    %246 = vector.multi_reduction <add>, %245, %cst_75 [1] : vector<4x32xf32> to vector<4xf32>
    %247 = vector.shape_cast %246 : vector<4xf32> to vector<4x1xf32>
    %248 = tpu.reciprocal %247 {approx = true} : vector<4x1xf32> -> vector<4x1xf32>
    %249 = vector.broadcast %248 : vector<4x1xf32> to vector<4x32xf32>
    %250 = arith.mulf %245, %249 : vector<4x32xf32>
    %251 = arith.mulf %250, %232 : vector<4x32xf32>
    %252 = tpu.concatenate %251, %208 in 1 : vector<4x32xf32>, vector<4x8xf32> -> vector<4x40xf32>
    %cst_76 = arith.constant dense<0.000000e+00> : vector<4x48xf32>
    %253 = tpu.matmul %252, %7, %cst_76 {dimension_numbers = #tpu.dot_dimension_numbers<[1], [0], [0], [1], [0, 0, 1, 1], [], []>} : vector<4x40xf32>, vector<40x48xf32>, vector<4x48xf32> -> vector<4x48xf32>
    %254 = vector.broadcast %8 : vector<1x48xf32> to vector<4x48xf32>
    %255 = arith.addf %253, %254 : vector<4x48xf32>
    %cst_77 = arith.constant 0.000000e+00 : f32
    %256 = vector.broadcast %cst_77 : f32 to vector<4x48xf32>
    %257 = arith.maximumf %255, %256 : vector<4x48xf32>
    %cst_78 = arith.constant dense<0.000000e+00> : vector<4x24xf32>
    %258 = tpu.matmul %257, %9, %cst_78 {dimension_numbers = #tpu.dot_dimension_numbers<[1], [0], [0], [1], [0, 0, 1, 1], [], []>} : vector<4x48xf32>, vector<48x24xf32>, vector<4x24xf32> -> vector<4x24xf32>
    %259 = vector.broadcast %10 : vector<1x24xf32> to vector<4x24xf32>
    %260 = arith.addf %258, %259 : vector<4x24xf32>
    %261 = vector.extract_strided_slice %260 {offsets = [0, 0], sizes = [4, 8], strides = [1, 1]} : vector<4x24xf32> to vector<4x8xf32>
    %262 = math.tanh %261 : vector<4x8xf32>
    %263 = vector.extract_strided_slice %260 {offsets = [0, 8], sizes = [4, 16], strides = [1, 1]} : vector<4x24xf32> to vector<4x16xf32>
    %264 = arith.negf %263 : vector<4x16xf32>
    %265 = math.exp %264 : vector<4x16xf32>
    %cst_79 = arith.constant 1.000000e+00 : f32
    %266 = vector.broadcast %cst_79 : f32 to vector<4x16xf32>
    %267 = arith.addf %266, %265 : vector<4x16xf32>
    %268 = arith.divf %266, %267 : vector<4x16xf32>
    %269 = vector.extract_strided_slice %268 {offsets = [0, 0], sizes = [4, 8], strides = [1, 1]} : vector<4x16xf32> to vector<4x8xf32>
    %270 = arith.mulf %269, %208 : vector<4x8xf32>
    %271 = vector.extract_strided_slice %268 {offsets = [0, 8], sizes = [4, 8], strides = [1, 1]} : vector<4x16xf32> to vector<4x8xf32>
    %272 = arith.mulf %271, %262 : vector<4x8xf32>
    %273 = arith.addf %270, %272 : vector<4x8xf32>
    %c4 = arith.constant 4 : index
    %c0_80 = arith.constant 0 : index
    %c0_81 = arith.constant 0 : index
    %274 = vector.load %arg0[%c4, %c0_80, %c0_81] : memref<8x4x16xf32, #tpu.memory_space<vmem>>, vector<1x4x16xf32>
    %275 = vector.shape_cast %274 : vector<1x4x16xf32> to vector<4x16xf32>
    %cst_82 = arith.constant dense<0.000000e+00> : vector<4x64xf32>
    %276 = tpu.matmul %275, %0, %cst_82 {dimension_numbers = #tpu.dot_dimension_numbers<[1], [0], [0], [1], [0, 0, 1, 1], [], []>} : vector<4x16xf32>, vector<16x64xf32>, vector<4x64xf32> -> vector<4x64xf32>
    %cst_83 = arith.constant dense<0.000000e+00> : vector<4x64xf32>
    %277 = tpu.matmul %231, %1, %cst_83 {dimension_numbers = #tpu.dot_dimension_numbers<[1], [0], [0], [1], [0, 0, 1, 1], [], []>} : vector<4x16xf32>, vector<16x64xf32>, vector<4x64xf32> -> vector<4x64xf32>
    %278 = arith.addf %276, %277 : vector<4x64xf32>
    %279 = vector.broadcast %2 : vector<1x64xf32> to vector<4x64xf32>
    %280 = arith.addf %278, %279 : vector<4x64xf32>
    %281 = vector.extract_strided_slice %280 {offsets = [0, 0], sizes = [4, 48], strides = [1, 1]} : vector<4x64xf32> to vector<4x48xf32>
    %282 = arith.negf %281 : vector<4x48xf32>
    %283 = math.exp %282 : vector<4x48xf32>
    %cst_84 = arith.constant 1.000000e+00 : f32
    %284 = vector.broadcast %cst_84 : f32 to vector<4x48xf32>
    %285 = arith.addf %284, %283 : vector<4x48xf32>
    %286 = arith.divf %284, %285 : vector<4x48xf32>
    %287 = vector.extract_strided_slice %286 {offsets = [0, 0], sizes = [4, 16], strides = [1, 1]} : vector<4x48xf32> to vector<4x16xf32>
    %288 = vector.extract_strided_slice %286 {offsets = [0, 16], sizes = [4, 16], strides = [1, 1]} : vector<4x48xf32> to vector<4x16xf32>
    %289 = vector.extract_strided_slice %286 {offsets = [0, 32], sizes = [4, 16], strides = [1, 1]} : vector<4x48xf32> to vector<4x16xf32>
    %290 = vector.extract_strided_slice %280 {offsets = [0, 48], sizes = [4, 16], strides = [1, 1]} : vector<4x64xf32> to vector<4x16xf32>
    %291 = math.tanh %290 : vector<4x16xf32>
    %292 = arith.mulf %288, %229 : vector<4x16xf32>
    %293 = arith.mulf %287, %291 : vector<4x16xf32>
    %294 = arith.addf %292, %293 : vector<4x16xf32>
    %295 = math.tanh %294 : vector<4x16xf32>
    %296 = arith.mulf %289, %295 : vector<4x16xf32>
    %297 = tpu.concatenate %229, %294 in 1 : vector<4x16xf32>, vector<4x16xf32> -> vector<4x32xf32>
    %cst_85 = arith.constant dense<0.000000e+00> : vector<4x16xf32>
    %298 = tpu.matmul %297, %3, %cst_85 {dimension_numbers = #tpu.dot_dimension_numbers<[1], [0], [0], [1], [0, 0, 1, 1], [], []>} : vector<4x32xf32>, vector<32x16xf32>, vector<4x16xf32> -> vector<4x16xf32>
    %299 = vector.broadcast %4 : vector<1x16xf32> to vector<4x16xf32>
    %300 = arith.addf %298, %299 : vector<4x16xf32>
    %cst_86 = arith.constant 0.000000e+00 : f32
    %301 = vector.broadcast %cst_86 : f32 to vector<4x16xf32>
    %302 = arith.maximumf %300, %301 : vector<4x16xf32>
    %cst_87 = arith.constant dense<0.000000e+00> : vector<4x32xf32>
    %303 = tpu.matmul %302, %5, %cst_87 {dimension_numbers = #tpu.dot_dimension_numbers<[1], [0], [0], [1], [0, 0, 1, 1], [], []>} : vector<4x16xf32>, vector<16x32xf32>, vector<4x32xf32> -> vector<4x32xf32>
    %304 = vector.broadcast %6 : vector<1x32xf32> to vector<4x32xf32>
    %305 = arith.addf %303, %304 : vector<4x32xf32>
    %cst_88 = arith.constant dense<0xFF800000> : vector<4xf32>
    %306 = vector.multi_reduction <maximumf>, %305, %cst_88 [1] : vector<4x32xf32> to vector<4xf32>
    %307 = vector.shape_cast %306 : vector<4xf32> to vector<4x1xf32>
    %308 = vector.broadcast %307 : vector<4x1xf32> to vector<4x32xf32>
    %309 = arith.subf %305, %308 : vector<4x32xf32>
    %310 = math.exp %309 : vector<4x32xf32>
    %cst_89 = arith.constant dense<0.000000e+00> : vector<4xf32>
    %311 = vector.multi_reduction <add>, %310, %cst_89 [1] : vector<4x32xf32> to vector<4xf32>
    %312 = vector.shape_cast %311 : vector<4xf32> to vector<4x1xf32>
    %313 = tpu.reciprocal %312 {approx = true} : vector<4x1xf32> -> vector<4x1xf32>
    %314 = vector.broadcast %313 : vector<4x1xf32> to vector<4x32xf32>
    %315 = arith.mulf %310, %314 : vector<4x32xf32>
    %316 = arith.mulf %315, %297 : vector<4x32xf32>
    %317 = tpu.concatenate %316, %273 in 1 : vector<4x32xf32>, vector<4x8xf32> -> vector<4x40xf32>
    %cst_90 = arith.constant dense<0.000000e+00> : vector<4x48xf32>
    %318 = tpu.matmul %317, %7, %cst_90 {dimension_numbers = #tpu.dot_dimension_numbers<[1], [0], [0], [1], [0, 0, 1, 1], [], []>} : vector<4x40xf32>, vector<40x48xf32>, vector<4x48xf32> -> vector<4x48xf32>
    %319 = vector.broadcast %8 : vector<1x48xf32> to vector<4x48xf32>
    %320 = arith.addf %318, %319 : vector<4x48xf32>
    %cst_91 = arith.constant 0.000000e+00 : f32
    %321 = vector.broadcast %cst_91 : f32 to vector<4x48xf32>
    %322 = arith.maximumf %320, %321 : vector<4x48xf32>
    %cst_92 = arith.constant dense<0.000000e+00> : vector<4x24xf32>
    %323 = tpu.matmul %322, %9, %cst_92 {dimension_numbers = #tpu.dot_dimension_numbers<[1], [0], [0], [1], [0, 0, 1, 1], [], []>} : vector<4x48xf32>, vector<48x24xf32>, vector<4x24xf32> -> vector<4x24xf32>
    %324 = vector.broadcast %10 : vector<1x24xf32> to vector<4x24xf32>
    %325 = arith.addf %323, %324 : vector<4x24xf32>
    %326 = vector.extract_strided_slice %325 {offsets = [0, 0], sizes = [4, 8], strides = [1, 1]} : vector<4x24xf32> to vector<4x8xf32>
    %327 = math.tanh %326 : vector<4x8xf32>
    %328 = vector.extract_strided_slice %325 {offsets = [0, 8], sizes = [4, 16], strides = [1, 1]} : vector<4x24xf32> to vector<4x16xf32>
    %329 = arith.negf %328 : vector<4x16xf32>
    %330 = math.exp %329 : vector<4x16xf32>
    %cst_93 = arith.constant 1.000000e+00 : f32
    %331 = vector.broadcast %cst_93 : f32 to vector<4x16xf32>
    %332 = arith.addf %331, %330 : vector<4x16xf32>
    %333 = arith.divf %331, %332 : vector<4x16xf32>
    %334 = vector.extract_strided_slice %333 {offsets = [0, 0], sizes = [4, 8], strides = [1, 1]} : vector<4x16xf32> to vector<4x8xf32>
    %335 = arith.mulf %334, %273 : vector<4x8xf32>
    %336 = vector.extract_strided_slice %333 {offsets = [0, 8], sizes = [4, 8], strides = [1, 1]} : vector<4x16xf32> to vector<4x8xf32>
    %337 = arith.mulf %336, %327 : vector<4x8xf32>
    %338 = arith.addf %335, %337 : vector<4x8xf32>
    %c5 = arith.constant 5 : index
    %c0_94 = arith.constant 0 : index
    %c0_95 = arith.constant 0 : index
    %339 = vector.load %arg0[%c5, %c0_94, %c0_95] : memref<8x4x16xf32, #tpu.memory_space<vmem>>, vector<1x4x16xf32>
    %340 = vector.shape_cast %339 : vector<1x4x16xf32> to vector<4x16xf32>
    %cst_96 = arith.constant dense<0.000000e+00> : vector<4x64xf32>
    %341 = tpu.matmul %340, %0, %cst_96 {dimension_numbers = #tpu.dot_dimension_numbers<[1], [0], [0], [1], [0, 0, 1, 1], [], []>} : vector<4x16xf32>, vector<16x64xf32>, vector<4x64xf32> -> vector<4x64xf32>
    %cst_97 = arith.constant dense<0.000000e+00> : vector<4x64xf32>
    %342 = tpu.matmul %296, %1, %cst_97 {dimension_numbers = #tpu.dot_dimension_numbers<[1], [0], [0], [1], [0, 0, 1, 1], [], []>} : vector<4x16xf32>, vector<16x64xf32>, vector<4x64xf32> -> vector<4x64xf32>
    %343 = arith.addf %341, %342 : vector<4x64xf32>
    %344 = vector.broadcast %2 : vector<1x64xf32> to vector<4x64xf32>
    %345 = arith.addf %343, %344 : vector<4x64xf32>
    %346 = vector.extract_strided_slice %345 {offsets = [0, 0], sizes = [4, 48], strides = [1, 1]} : vector<4x64xf32> to vector<4x48xf32>
    %347 = arith.negf %346 : vector<4x48xf32>
    %348 = math.exp %347 : vector<4x48xf32>
    %cst_98 = arith.constant 1.000000e+00 : f32
    %349 = vector.broadcast %cst_98 : f32 to vector<4x48xf32>
    %350 = arith.addf %349, %348 : vector<4x48xf32>
    %351 = arith.divf %349, %350 : vector<4x48xf32>
    %352 = vector.extract_strided_slice %351 {offsets = [0, 0], sizes = [4, 16], strides = [1, 1]} : vector<4x48xf32> to vector<4x16xf32>
    %353 = vector.extract_strided_slice %351 {offsets = [0, 16], sizes = [4, 16], strides = [1, 1]} : vector<4x48xf32> to vector<4x16xf32>
    %354 = vector.extract_strided_slice %351 {offsets = [0, 32], sizes = [4, 16], strides = [1, 1]} : vector<4x48xf32> to vector<4x16xf32>
    %355 = vector.extract_strided_slice %345 {offsets = [0, 48], sizes = [4, 16], strides = [1, 1]} : vector<4x64xf32> to vector<4x16xf32>
    %356 = math.tanh %355 : vector<4x16xf32>
    %357 = arith.mulf %353, %294 : vector<4x16xf32>
    %358 = arith.mulf %352, %356 : vector<4x16xf32>
    %359 = arith.addf %357, %358 : vector<4x16xf32>
    %360 = math.tanh %359 : vector<4x16xf32>
    %361 = arith.mulf %354, %360 : vector<4x16xf32>
    %362 = tpu.concatenate %294, %359 in 1 : vector<4x16xf32>, vector<4x16xf32> -> vector<4x32xf32>
    %cst_99 = arith.constant dense<0.000000e+00> : vector<4x16xf32>
    %363 = tpu.matmul %362, %3, %cst_99 {dimension_numbers = #tpu.dot_dimension_numbers<[1], [0], [0], [1], [0, 0, 1, 1], [], []>} : vector<4x32xf32>, vector<32x16xf32>, vector<4x16xf32> -> vector<4x16xf32>
    %364 = vector.broadcast %4 : vector<1x16xf32> to vector<4x16xf32>
    %365 = arith.addf %363, %364 : vector<4x16xf32>
    %cst_100 = arith.constant 0.000000e+00 : f32
    %366 = vector.broadcast %cst_100 : f32 to vector<4x16xf32>
    %367 = arith.maximumf %365, %366 : vector<4x16xf32>
    %cst_101 = arith.constant dense<0.000000e+00> : vector<4x32xf32>
    %368 = tpu.matmul %367, %5, %cst_101 {dimension_numbers = #tpu.dot_dimension_numbers<[1], [0], [0], [1], [0, 0, 1, 1], [], []>} : vector<4x16xf32>, vector<16x32xf32>, vector<4x32xf32> -> vector<4x32xf32>
    %369 = vector.broadcast %6 : vector<1x32xf32> to vector<4x32xf32>
    %370 = arith.addf %368, %369 : vector<4x32xf32>
    %cst_102 = arith.constant dense<0xFF800000> : vector<4xf32>
    %371 = vector.multi_reduction <maximumf>, %370, %cst_102 [1] : vector<4x32xf32> to vector<4xf32>
    %372 = vector.shape_cast %371 : vector<4xf32> to vector<4x1xf32>
    %373 = vector.broadcast %372 : vector<4x1xf32> to vector<4x32xf32>
    %374 = arith.subf %370, %373 : vector<4x32xf32>
    %375 = math.exp %374 : vector<4x32xf32>
    %cst_103 = arith.constant dense<0.000000e+00> : vector<4xf32>
    %376 = vector.multi_reduction <add>, %375, %cst_103 [1] : vector<4x32xf32> to vector<4xf32>
    %377 = vector.shape_cast %376 : vector<4xf32> to vector<4x1xf32>
    %378 = tpu.reciprocal %377 {approx = true} : vector<4x1xf32> -> vector<4x1xf32>
    %379 = vector.broadcast %378 : vector<4x1xf32> to vector<4x32xf32>
    %380 = arith.mulf %375, %379 : vector<4x32xf32>
    %381 = arith.mulf %380, %362 : vector<4x32xf32>
    %382 = tpu.concatenate %381, %338 in 1 : vector<4x32xf32>, vector<4x8xf32> -> vector<4x40xf32>
    %cst_104 = arith.constant dense<0.000000e+00> : vector<4x48xf32>
    %383 = tpu.matmul %382, %7, %cst_104 {dimension_numbers = #tpu.dot_dimension_numbers<[1], [0], [0], [1], [0, 0, 1, 1], [], []>} : vector<4x40xf32>, vector<40x48xf32>, vector<4x48xf32> -> vector<4x48xf32>
    %384 = vector.broadcast %8 : vector<1x48xf32> to vector<4x48xf32>
    %385 = arith.addf %383, %384 : vector<4x48xf32>
    %cst_105 = arith.constant 0.000000e+00 : f32
    %386 = vector.broadcast %cst_105 : f32 to vector<4x48xf32>
    %387 = arith.maximumf %385, %386 : vector<4x48xf32>
    %cst_106 = arith.constant dense<0.000000e+00> : vector<4x24xf32>
    %388 = tpu.matmul %387, %9, %cst_106 {dimension_numbers = #tpu.dot_dimension_numbers<[1], [0], [0], [1], [0, 0, 1, 1], [], []>} : vector<4x48xf32>, vector<48x24xf32>, vector<4x24xf32> -> vector<4x24xf32>
    %389 = vector.broadcast %10 : vector<1x24xf32> to vector<4x24xf32>
    %390 = arith.addf %388, %389 : vector<4x24xf32>
    %391 = vector.extract_strided_slice %390 {offsets = [0, 0], sizes = [4, 8], strides = [1, 1]} : vector<4x24xf32> to vector<4x8xf32>
    %392 = math.tanh %391 : vector<4x8xf32>
    %393 = vector.extract_strided_slice %390 {offsets = [0, 8], sizes = [4, 16], strides = [1, 1]} : vector<4x24xf32> to vector<4x16xf32>
    %394 = arith.negf %393 : vector<4x16xf32>
    %395 = math.exp %394 : vector<4x16xf32>
    %cst_107 = arith.constant 1.000000e+00 : f32
    %396 = vector.broadcast %cst_107 : f32 to vector<4x16xf32>
    %397 = arith.addf %396, %395 : vector<4x16xf32>
    %398 = arith.divf %396, %397 : vector<4x16xf32>
    %399 = vector.extract_strided_slice %398 {offsets = [0, 0], sizes = [4, 8], strides = [1, 1]} : vector<4x16xf32> to vector<4x8xf32>
    %400 = arith.mulf %399, %338 : vector<4x8xf32>
    %401 = vector.extract_strided_slice %398 {offsets = [0, 8], sizes = [4, 8], strides = [1, 1]} : vector<4x16xf32> to vector<4x8xf32>
    %402 = arith.mulf %401, %392 : vector<4x8xf32>
    %403 = arith.addf %400, %402 : vector<4x8xf32>
    %c6 = arith.constant 6 : index
    %c0_108 = arith.constant 0 : index
    %c0_109 = arith.constant 0 : index
    %404 = vector.load %arg0[%c6, %c0_108, %c0_109] : memref<8x4x16xf32, #tpu.memory_space<vmem>>, vector<1x4x16xf32>
    %405 = vector.shape_cast %404 : vector<1x4x16xf32> to vector<4x16xf32>
    %cst_110 = arith.constant dense<0.000000e+00> : vector<4x64xf32>
    %406 = tpu.matmul %405, %0, %cst_110 {dimension_numbers = #tpu.dot_dimension_numbers<[1], [0], [0], [1], [0, 0, 1, 1], [], []>} : vector<4x16xf32>, vector<16x64xf32>, vector<4x64xf32> -> vector<4x64xf32>
    %cst_111 = arith.constant dense<0.000000e+00> : vector<4x64xf32>
    %407 = tpu.matmul %361, %1, %cst_111 {dimension_numbers = #tpu.dot_dimension_numbers<[1], [0], [0], [1], [0, 0, 1, 1], [], []>} : vector<4x16xf32>, vector<16x64xf32>, vector<4x64xf32> -> vector<4x64xf32>
    %408 = arith.addf %406, %407 : vector<4x64xf32>
    %409 = vector.broadcast %2 : vector<1x64xf32> to vector<4x64xf32>
    %410 = arith.addf %408, %409 : vector<4x64xf32>
    %411 = vector.extract_strided_slice %410 {offsets = [0, 0], sizes = [4, 48], strides = [1, 1]} : vector<4x64xf32> to vector<4x48xf32>
    %412 = arith.negf %411 : vector<4x48xf32>
    %413 = math.exp %412 : vector<4x48xf32>
    %cst_112 = arith.constant 1.000000e+00 : f32
    %414 = vector.broadcast %cst_112 : f32 to vector<4x48xf32>
    %415 = arith.addf %414, %413 : vector<4x48xf32>
    %416 = arith.divf %414, %415 : vector<4x48xf32>
    %417 = vector.extract_strided_slice %416 {offsets = [0, 0], sizes = [4, 16], strides = [1, 1]} : vector<4x48xf32> to vector<4x16xf32>
    %418 = vector.extract_strided_slice %416 {offsets = [0, 16], sizes = [4, 16], strides = [1, 1]} : vector<4x48xf32> to vector<4x16xf32>
    %419 = vector.extract_strided_slice %416 {offsets = [0, 32], sizes = [4, 16], strides = [1, 1]} : vector<4x48xf32> to vector<4x16xf32>
    %420 = vector.extract_strided_slice %410 {offsets = [0, 48], sizes = [4, 16], strides = [1, 1]} : vector<4x64xf32> to vector<4x16xf32>
    %421 = math.tanh %420 : vector<4x16xf32>
    %422 = arith.mulf %418, %359 : vector<4x16xf32>
    %423 = arith.mulf %417, %421 : vector<4x16xf32>
    %424 = arith.addf %422, %423 : vector<4x16xf32>
    %425 = math.tanh %424 : vector<4x16xf32>
    %426 = arith.mulf %419, %425 : vector<4x16xf32>
    %427 = tpu.concatenate %359, %424 in 1 : vector<4x16xf32>, vector<4x16xf32> -> vector<4x32xf32>
    %cst_113 = arith.constant dense<0.000000e+00> : vector<4x16xf32>
    %428 = tpu.matmul %427, %3, %cst_113 {dimension_numbers = #tpu.dot_dimension_numbers<[1], [0], [0], [1], [0, 0, 1, 1], [], []>} : vector<4x32xf32>, vector<32x16xf32>, vector<4x16xf32> -> vector<4x16xf32>
    %429 = vector.broadcast %4 : vector<1x16xf32> to vector<4x16xf32>
    %430 = arith.addf %428, %429 : vector<4x16xf32>
    %cst_114 = arith.constant 0.000000e+00 : f32
    %431 = vector.broadcast %cst_114 : f32 to vector<4x16xf32>
    %432 = arith.maximumf %430, %431 : vector<4x16xf32>
    %cst_115 = arith.constant dense<0.000000e+00> : vector<4x32xf32>
    %433 = tpu.matmul %432, %5, %cst_115 {dimension_numbers = #tpu.dot_dimension_numbers<[1], [0], [0], [1], [0, 0, 1, 1], [], []>} : vector<4x16xf32>, vector<16x32xf32>, vector<4x32xf32> -> vector<4x32xf32>
    %434 = vector.broadcast %6 : vector<1x32xf32> to vector<4x32xf32>
    %435 = arith.addf %433, %434 : vector<4x32xf32>
    %cst_116 = arith.constant dense<0xFF800000> : vector<4xf32>
    %436 = vector.multi_reduction <maximumf>, %435, %cst_116 [1] : vector<4x32xf32> to vector<4xf32>
    %437 = vector.shape_cast %436 : vector<4xf32> to vector<4x1xf32>
    %438 = vector.broadcast %437 : vector<4x1xf32> to vector<4x32xf32>
    %439 = arith.subf %435, %438 : vector<4x32xf32>
    %440 = math.exp %439 : vector<4x32xf32>
    %cst_117 = arith.constant dense<0.000000e+00> : vector<4xf32>
    %441 = vector.multi_reduction <add>, %440, %cst_117 [1] : vector<4x32xf32> to vector<4xf32>
    %442 = vector.shape_cast %441 : vector<4xf32> to vector<4x1xf32>
    %443 = tpu.reciprocal %442 {approx = true} : vector<4x1xf32> -> vector<4x1xf32>
    %444 = vector.broadcast %443 : vector<4x1xf32> to vector<4x32xf32>
    %445 = arith.mulf %440, %444 : vector<4x32xf32>
    %446 = arith.mulf %445, %427 : vector<4x32xf32>
    %447 = tpu.concatenate %446, %403 in 1 : vector<4x32xf32>, vector<4x8xf32> -> vector<4x40xf32>
    %cst_118 = arith.constant dense<0.000000e+00> : vector<4x48xf32>
    %448 = tpu.matmul %447, %7, %cst_118 {dimension_numbers = #tpu.dot_dimension_numbers<[1], [0], [0], [1], [0, 0, 1, 1], [], []>} : vector<4x40xf32>, vector<40x48xf32>, vector<4x48xf32> -> vector<4x48xf32>
    %449 = vector.broadcast %8 : vector<1x48xf32> to vector<4x48xf32>
    %450 = arith.addf %448, %449 : vector<4x48xf32>
    %cst_119 = arith.constant 0.000000e+00 : f32
    %451 = vector.broadcast %cst_119 : f32 to vector<4x48xf32>
    %452 = arith.maximumf %450, %451 : vector<4x48xf32>
    %cst_120 = arith.constant dense<0.000000e+00> : vector<4x24xf32>
    %453 = tpu.matmul %452, %9, %cst_120 {dimension_numbers = #tpu.dot_dimension_numbers<[1], [0], [0], [1], [0, 0, 1, 1], [], []>} : vector<4x48xf32>, vector<48x24xf32>, vector<4x24xf32> -> vector<4x24xf32>
    %454 = vector.broadcast %10 : vector<1x24xf32> to vector<4x24xf32>
    %455 = arith.addf %453, %454 : vector<4x24xf32>
    %456 = vector.extract_strided_slice %455 {offsets = [0, 0], sizes = [4, 8], strides = [1, 1]} : vector<4x24xf32> to vector<4x8xf32>
    %457 = math.tanh %456 : vector<4x8xf32>
    %458 = vector.extract_strided_slice %455 {offsets = [0, 8], sizes = [4, 16], strides = [1, 1]} : vector<4x24xf32> to vector<4x16xf32>
    %459 = arith.negf %458 : vector<4x16xf32>
    %460 = math.exp %459 : vector<4x16xf32>
    %cst_121 = arith.constant 1.000000e+00 : f32
    %461 = vector.broadcast %cst_121 : f32 to vector<4x16xf32>
    %462 = arith.addf %461, %460 : vector<4x16xf32>
    %463 = arith.divf %461, %462 : vector<4x16xf32>
    %464 = vector.extract_strided_slice %463 {offsets = [0, 0], sizes = [4, 8], strides = [1, 1]} : vector<4x16xf32> to vector<4x8xf32>
    %465 = arith.mulf %464, %403 : vector<4x8xf32>
    %466 = vector.extract_strided_slice %463 {offsets = [0, 8], sizes = [4, 8], strides = [1, 1]} : vector<4x16xf32> to vector<4x8xf32>
    %467 = arith.mulf %466, %457 : vector<4x8xf32>
    %468 = arith.addf %465, %467 : vector<4x8xf32>
    %c7 = arith.constant 7 : index
    %c0_122 = arith.constant 0 : index
    %c0_123 = arith.constant 0 : index
    %469 = vector.load %arg0[%c7, %c0_122, %c0_123] : memref<8x4x16xf32, #tpu.memory_space<vmem>>, vector<1x4x16xf32>
    %470 = vector.shape_cast %469 : vector<1x4x16xf32> to vector<4x16xf32>
    %cst_124 = arith.constant dense<0.000000e+00> : vector<4x64xf32>
    %471 = tpu.matmul %470, %0, %cst_124 {dimension_numbers = #tpu.dot_dimension_numbers<[1], [0], [0], [1], [0, 0, 1, 1], [], []>} : vector<4x16xf32>, vector<16x64xf32>, vector<4x64xf32> -> vector<4x64xf32>
    %cst_125 = arith.constant dense<0.000000e+00> : vector<4x64xf32>
    %472 = tpu.matmul %426, %1, %cst_125 {dimension_numbers = #tpu.dot_dimension_numbers<[1], [0], [0], [1], [0, 0, 1, 1], [], []>} : vector<4x16xf32>, vector<16x64xf32>, vector<4x64xf32> -> vector<4x64xf32>
    %473 = arith.addf %471, %472 : vector<4x64xf32>
    %474 = vector.broadcast %2 : vector<1x64xf32> to vector<4x64xf32>
    %475 = arith.addf %473, %474 : vector<4x64xf32>
    %476 = vector.extract_strided_slice %475 {offsets = [0, 0], sizes = [4, 48], strides = [1, 1]} : vector<4x64xf32> to vector<4x48xf32>
    %477 = arith.negf %476 : vector<4x48xf32>
    %478 = math.exp %477 : vector<4x48xf32>
    %cst_126 = arith.constant 1.000000e+00 : f32
    %479 = vector.broadcast %cst_126 : f32 to vector<4x48xf32>
    %480 = arith.addf %479, %478 : vector<4x48xf32>
    %481 = arith.divf %479, %480 : vector<4x48xf32>
    %482 = vector.extract_strided_slice %481 {offsets = [0, 0], sizes = [4, 16], strides = [1, 1]} : vector<4x48xf32> to vector<4x16xf32>
    %483 = vector.extract_strided_slice %481 {offsets = [0, 16], sizes = [4, 16], strides = [1, 1]} : vector<4x48xf32> to vector<4x16xf32>
    %484 = vector.extract_strided_slice %481 {offsets = [0, 32], sizes = [4, 16], strides = [1, 1]} : vector<4x48xf32> to vector<4x16xf32>
    %485 = vector.extract_strided_slice %475 {offsets = [0, 48], sizes = [4, 16], strides = [1, 1]} : vector<4x64xf32> to vector<4x16xf32>
    %486 = math.tanh %485 : vector<4x16xf32>
    %487 = arith.mulf %483, %424 : vector<4x16xf32>
    %488 = arith.mulf %482, %486 : vector<4x16xf32>
    %489 = arith.addf %487, %488 : vector<4x16xf32>
    %490 = math.tanh %489 : vector<4x16xf32>
    %491 = arith.mulf %484, %490 : vector<4x16xf32>
    %492 = tpu.concatenate %424, %489 in 1 : vector<4x16xf32>, vector<4x16xf32> -> vector<4x32xf32>
    %cst_127 = arith.constant dense<0.000000e+00> : vector<4x16xf32>
    %493 = tpu.matmul %492, %3, %cst_127 {dimension_numbers = #tpu.dot_dimension_numbers<[1], [0], [0], [1], [0, 0, 1, 1], [], []>} : vector<4x32xf32>, vector<32x16xf32>, vector<4x16xf32> -> vector<4x16xf32>
    %494 = vector.broadcast %4 : vector<1x16xf32> to vector<4x16xf32>
    %495 = arith.addf %493, %494 : vector<4x16xf32>
    %cst_128 = arith.constant 0.000000e+00 : f32
    %496 = vector.broadcast %cst_128 : f32 to vector<4x16xf32>
    %497 = arith.maximumf %495, %496 : vector<4x16xf32>
    %cst_129 = arith.constant dense<0.000000e+00> : vector<4x32xf32>
    %498 = tpu.matmul %497, %5, %cst_129 {dimension_numbers = #tpu.dot_dimension_numbers<[1], [0], [0], [1], [0, 0, 1, 1], [], []>} : vector<4x16xf32>, vector<16x32xf32>, vector<4x32xf32> -> vector<4x32xf32>
    %499 = vector.broadcast %6 : vector<1x32xf32> to vector<4x32xf32>
    %500 = arith.addf %498, %499 : vector<4x32xf32>
    %cst_130 = arith.constant dense<0xFF800000> : vector<4xf32>
    %501 = vector.multi_reduction <maximumf>, %500, %cst_130 [1] : vector<4x32xf32> to vector<4xf32>
    %502 = vector.shape_cast %501 : vector<4xf32> to vector<4x1xf32>
    %503 = vector.broadcast %502 : vector<4x1xf32> to vector<4x32xf32>
    %504 = arith.subf %500, %503 : vector<4x32xf32>
    %505 = math.exp %504 : vector<4x32xf32>
    %cst_131 = arith.constant dense<0.000000e+00> : vector<4xf32>
    %506 = vector.multi_reduction <add>, %505, %cst_131 [1] : vector<4x32xf32> to vector<4xf32>
    %507 = vector.shape_cast %506 : vector<4xf32> to vector<4x1xf32>
    %508 = tpu.reciprocal %507 {approx = true} : vector<4x1xf32> -> vector<4x1xf32>
    %509 = vector.broadcast %508 : vector<4x1xf32> to vector<4x32xf32>
    %510 = arith.mulf %505, %509 : vector<4x32xf32>
    %511 = arith.mulf %510, %492 : vector<4x32xf32>
    %512 = tpu.concatenate %511, %468 in 1 : vector<4x32xf32>, vector<4x8xf32> -> vector<4x40xf32>
    %cst_132 = arith.constant dense<0.000000e+00> : vector<4x48xf32>
    %513 = tpu.matmul %512, %7, %cst_132 {dimension_numbers = #tpu.dot_dimension_numbers<[1], [0], [0], [1], [0, 0, 1, 1], [], []>} : vector<4x40xf32>, vector<40x48xf32>, vector<4x48xf32> -> vector<4x48xf32>
    %514 = vector.broadcast %8 : vector<1x48xf32> to vector<4x48xf32>
    %515 = arith.addf %513, %514 : vector<4x48xf32>
    %cst_133 = arith.constant 0.000000e+00 : f32
    %516 = vector.broadcast %cst_133 : f32 to vector<4x48xf32>
    %517 = arith.maximumf %515, %516 : vector<4x48xf32>
    %cst_134 = arith.constant dense<0.000000e+00> : vector<4x24xf32>
    %518 = tpu.matmul %517, %9, %cst_134 {dimension_numbers = #tpu.dot_dimension_numbers<[1], [0], [0], [1], [0, 0, 1, 1], [], []>} : vector<4x48xf32>, vector<48x24xf32>, vector<4x24xf32> -> vector<4x24xf32>
    %519 = vector.broadcast %10 : vector<1x24xf32> to vector<4x24xf32>
    %520 = arith.addf %518, %519 : vector<4x24xf32>
    %521 = vector.extract_strided_slice %520 {offsets = [0, 0], sizes = [4, 8], strides = [1, 1]} : vector<4x24xf32> to vector<4x8xf32>
    %522 = math.tanh %521 : vector<4x8xf32>
    %523 = vector.extract_strided_slice %520 {offsets = [0, 8], sizes = [4, 16], strides = [1, 1]} : vector<4x24xf32> to vector<4x16xf32>
    %524 = arith.negf %523 : vector<4x16xf32>
    %525 = math.exp %524 : vector<4x16xf32>
    %cst_135 = arith.constant 1.000000e+00 : f32
    %526 = vector.broadcast %cst_135 : f32 to vector<4x16xf32>
    %527 = arith.addf %526, %525 : vector<4x16xf32>
    %528 = arith.divf %526, %527 : vector<4x16xf32>
    %529 = vector.extract_strided_slice %528 {offsets = [0, 0], sizes = [4, 8], strides = [1, 1]} : vector<4x16xf32> to vector<4x8xf32>
    %530 = arith.mulf %529, %468 : vector<4x8xf32>
    %531 = vector.extract_strided_slice %528 {offsets = [0, 8], sizes = [4, 8], strides = [1, 1]} : vector<4x16xf32> to vector<4x8xf32>
    %532 = arith.mulf %531, %522 : vector<4x8xf32>
    %533 = arith.addf %530, %532 : vector<4x8xf32>
    %534 = tpu.concatenate %491, %533 in 1 : vector<4x16xf32>, vector<4x8xf32> -> vector<4x24xf32>
    %c0_136 = arith.constant 0 : index
    %c0_137 = arith.constant 0 : index
    %535 = vector.load %arg12[%c0_136, %c0_137] : memref<4x24xf32, #tpu.memory_space<vmem>>, vector<4x24xf32>
    tpu.vector_store %arg12[%c0_136, %c0_137], %534 {strides = array<i32>} : memref<4x24xf32, #tpu.memory_space<vmem>>, vector<4x24xf32>,
    return
  }
}

</mosaic_0001>

<llo_original>
// kernel: mfn_forward.1
$region0: #{mfn_forward.1}
  #allocation0 [shape = 'u32[]', space=smem, size = 0x4, offset = 0x4, fixed_abs, tag = 'smem constant byte address 0x4 - core index']
  #allocation1 [shape = 'u32[72,128]{1,0:T(1,128)}', space=vmem, size = 0x9000, scoped, tag = 'internal scratch']
  %s0 = inlined_call_operand.vmem [shape: f32[8,4,16], index: 0, kind: input, shape index: {}]
  %s1 = inlined_call_operand.vmem [shape: f32[16,64], index: 1, kind: input, shape index: {}]
  %s2 = inlined_call_operand.vmem [shape: f32[16,64], index: 2, kind: input, shape index: {}]
  %s3 = inlined_call_operand.vmem [shape: f32[1,64], index: 3, kind: input, shape index: {}]
  %s4 = inlined_call_operand.vmem [shape: f32[32,16], index: 4, kind: input, shape index: {}]
  %s5 = inlined_call_operand.vmem [shape: f32[1,16], index: 5, kind: input, shape index: {}]
  %s6 = inlined_call_operand.vmem [shape: f32[16,32], index: 6, kind: input, shape index: {}]
  %s7 = inlined_call_operand.vmem [shape: f32[1,32], index: 7, kind: input, shape index: {}]
  %s8 = inlined_call_operand.vmem [shape: f32[40,48], index: 8, kind: input, shape index: {}]
  %s9 = inlined_call_operand.vmem [shape: f32[1,48], index: 9, kind: input, shape index: {}]
  %s10 = inlined_call_operand.vmem [shape: f32[48,24], index: 10, kind: input, shape index: {}]
  %s11 = inlined_call_operand.vmem [shape: f32[1,24], index: 11, kind: input, shape index: {}]
  %s12 = inlined_call_operand.hbm [shape: f32[4,24], index: 12, kind: output, shape index: {}]
  %s13 = sld [smem:[#allocation0]]
  $region58: #{mfn_forward.1} parent=0
    _
  %s15 = ssub.s32 1, %s13
  %s16 = scalar_select 0, %s15, %s13
  $region1: #{mfn_forward.1} parent=0
    #allocation2 [shape = 'u8[2048]{0}', space=vmem, size = 0x800, scoped, tag = 'output window, operand 0, single buffered']
    #allocation3 [shape = 's32[1]{0}', space=sflag, size = 0x4, scoped, tag = 'scoped memory for mfn_forward.1']
    %17 = vsyncpa [#allocation3], 0
    // Predicated region
    $region2: #{mfn_forward.1} parent=1 // pred_check
      _
    $region3: #{mfn_forward.1} parent=1 // pred_check_branch
      %19 = sbr.rel (0) target = $region5
    $region4: #{mfn_forward.1} parent=1 // pred_region
      _
    $region5: #{mfn_forward.1} parent=1 // pred_fallthru
      _
    // Predicated region
    $region6: #{mfn_forward.1} parent=1 // pred_check
      _
    $region7: #{mfn_forward.1} parent=1 // pred_check_branch
      %21 = sbr.rel (0) target = $region9
    $region8: #{mfn_forward.1} parent=1 // pred_region
      _
    $region9: #{mfn_forward.1} parent=1 // pred_fallthru
      _
    // Predicated region
    $region10: #{mfn_forward.1} parent=1 // pred_check
      _
    $region11: #{mfn_forward.1} parent=1 // pred_check_branch
      %23 = sbr.rel (0) target = $region13
    $region12: #{mfn_forward.1} parent=1 // pred_region
      _
    $region13: #{mfn_forward.1} parent=1 // pred_fallthru
      _
    // Predicated region
    $region14: #{mfn_forward.1} parent=1 // pred_check
      _
    $region15: #{mfn_forward.1} parent=1 // pred_check_branch
      %25 = sbr.rel (0) target = $region17
    $region16: #{mfn_forward.1} parent=1 // pred_region
      _
    $region17: #{mfn_forward.1} parent=1 // pred_fallthru
      _
    // Predicated region
    $region18: #{mfn_forward.1} parent=1 // pred_check
      _
    $region19: #{mfn_forward.1} parent=1 // pred_check_branch
      %27 = sbr.rel (0) target = $region21
    $region20: #{mfn_forward.1} parent=1 // pred_region
      _
    $region21: #{mfn_forward.1} parent=1 // pred_fallthru
      _
    // Predicated region
    $region22: #{mfn_forward.1} parent=1 // pred_check
      _
    $region23: #{mfn_forward.1} parent=1 // pred_check_branch
      %29 = sbr.rel (0) target = $region25
    $region24: #{mfn_forward.1} parent=1 // pred_region
      _
    $region25: #{mfn_forward.1} parent=1 // pred_fallthru
      _
    // Predicated region
    $region26: #{mfn_forward.1} parent=1 // pred_check
      _
    $region27: #{mfn_forward.1} parent=1 // pred_check_branch
      %31 = sbr.rel (0) target = $region29
    $region28: #{mfn_forward.1} parent=1 // pred_region
      _
    $region29: #{mfn_forward.1} parent=1 // pred_fallthru
      _
    // Predicated region
    $region30: #{mfn_forward.1} parent=1 // pred_check
      _
    $region31: #{mfn_forward.1} parent=1 // pred_check_branch
      %33 = sbr.rel (0) target = $region33
    $region32: #{mfn_forward.1} parent=1 // pred_region
      _
    $region33: #{mfn_forward.1} parent=1 // pred_fallthru
      _
    // Predicated region
    $region34: #{mfn_forward.1} parent=1 // pred_check
      _
    $region35: #{mfn_forward.1} parent=1 // pred_check_branch
      %35 = sbr.rel (0) target = $region37
    $region36: #{mfn_forward.1} parent=1 // pred_region
      _
    $region37: #{mfn_forward.1} parent=1 // pred_fallthru
      _
    // Predicated region
    $region38: #{mfn_forward.1} parent=1 // pred_check
      _
    $region39: #{mfn_forward.1} parent=1 // pred_check_branch
      %37 = sbr.rel (0) target = $region41
    $region40: #{mfn_forward.1} parent=1 // pred_region
      _
    $region41: #{mfn_forward.1} parent=1 // pred_fallthru
      _
    // Predicated region
    $region42: #{mfn_forward.1} parent=1 // pred_check
      _
    $region43: #{mfn_forward.1} parent=1 // pred_check_branch
      %39 = sbr.rel (0) target = $region45
    $region44: #{mfn_forward.1} parent=1 // pred_region
      _
    $region45: #{mfn_forward.1} parent=1 // pred_fallthru
      _
    // Predicated region
    $region46: #{mfn_forward.1} parent=1 // pred_check
      _
    $region47: #{mfn_forward.1} parent=1 // pred_check_branch
      %41 = sbr.rel (0) target = $region49
    $region48: #{mfn_forward.1} parent=1 // pred_region
      _
    $region49: #{mfn_forward.1} parent=1 // pred_fallthru
      _
    %v42 = vld [vmem:[%s1] sm:$0xff]
    %v43 = vld [vmem:[%s1 + $0x8] sm:$0xff]
    %v44 = vld [vmem:[%s2] sm:$0xff]
    %v45 = vld [vmem:[%s2 + $0x8] sm:$0xff]
    %v46 = vld [vmem:[%s3] sm:$0x1]
    %v47 = vld [vmem:[%s4] sm:$0xff]
    %v48 = vld [vmem:[%s4 + $0x8] sm:$0xff]
    %v49 = vld [vmem:[%s4 + $0x10] sm:$0xff]
    %v50 = vld [vmem:[%s4 + $0x18] sm:$0xff]
    %v51 = vld [vmem:[%s5] sm:$0x1]
    %v52 = vld [vmem:[%s6] sm:$0xff]
    %v53 = vld [vmem:[%s6 + $0x8] sm:$0xff]
    %v54 = vld [vmem:[%s7] sm:$0x1]
    %v55 = vld [vmem:[%s8] sm:$0xff]
    %v56 = vld [vmem:[%s8 + $0x8] sm:$0xff]
    %v57 = vld [vmem:[%s8 + $0x10] sm:$0xff]
    %v58 = vld [vmem:[%s8 + $0x18] sm:$0xff]
    %v59 = vld [vmem:[%s8 + $0x20] sm:$0xff]
    %v60 = vld [vmem:[%s9] sm:$0x1]
    %v61 = vld [vmem:[%s10] sm:$0xff]
    %v62 = vld [vmem:[%s10 + $0x8] sm:$0xff]
    %v63 = vld [vmem:[%s10 + $0x10] sm:$0xff]
    %v64 = vld [vmem:[%s10 + $0x18] sm:$0xff]
    %v65 = vld [vmem:[%s10 + $0x20] sm:$0xff]
    %v66 = vld [vmem:[%s10 + $0x28] sm:$0xff]
    %v67 = vld [vmem:[%s11] sm:$0x1]
    %v68 = vld [vmem:[%s0] sm:$0xf]
    %vm69 = vcmask 130048
    %v71 = vsel %vm69, 0.0, 0
    %73 = vmatpush.msra.mxu0 0.0
    %74 = vmatpush.msra.mxu0 0.0
    %75 = vmatpush.msra.mxu0 0.0
    %76 = vmatpush.msra.mxu0 0.0
    %77 = vmatpush.msra.mxu0 0.0
    %78 = vmatpush.msra.mxu0 0.0
    %79 = vmatpush.msra.mxu0 0.0
    %80 = vmatpush.msra.mxu0 0.0
    %81 = vmatpush.msra.mxu0 0.0
    %82 = vmatpush.msra.mxu0 0.0
    %83 = vmatpush.msra.mxu0 0.0
    %84 = vmatpush.msra.mxu0 0.0
    %85 = vmatpush.msra.mxu0 0.0
    %86 = vmatpush.msra.mxu0 0.0
    %87 = vmatpush.msra.mxu0 %v45
    %88 = vmatpush.msra.mxu0 %v44
    %89 = vmatmul.f32.gmra.mxu0 %v71
    %v90 = vpop.f32.mrf.mxu0
    %v91 = vadd.f32 0.0, %v90
    %92 = vdwg.mxu0
    %v94 = vsel %vm69, %v68, 0
    %96 = vmatpush.msra.mxu0 0.0
    %97 = vmatpush.msra.mxu0 0.0
    %98 = vmatpush.msra.mxu0 0.0
    %99 = vmatpush.msra.mxu0 0.0
    %100 = vmatpush.msra.mxu0 0.0
    %101 = vmatpush.msra.mxu0 0.0
    %102 = vmatpush.msra.mxu0 0.0
    %103 = vmatpush.msra.mxu0 0.0
    %104 = vmatpush.msra.mxu0 0.0
    %105 = vmatpush.msra.mxu0 0.0
    %106 = vmatpush.msra.mxu0 0.0
    %107 = vmatpush.msra.mxu0 0.0
    %108 = vmatpush.msra.mxu0 0.0
    %109 = vmatpush.msra.mxu0 0.0
    %110 = vmatpush.msra.mxu0 %v43
    %111 = vmatpush.msra.mxu0 %v42
    %112 = vmatmul.f32.gmra.mxu0 %v94
    %v113 = vpop.f32.mrf.mxu0
    %v114 = vadd.f32 %v91, %v113
    %115 = vdwg.mxu0
    %v117 = vperm.slane %v46, 0
    %v119 = vadd.f32 %v114, %v117
    %v120 = vxor.u32 %v119, 2147483648
    %v121 = vmul.f32 %v120, 1.442695
    %v122 = vpow.pop %v121
    %v123 = vadd.f32 %v122, 1.0
    %v124 = vrcp.pop %v123
    %v125 = vmul.f32 %v123, %v124
    %v126 = vsub.f32 1.0, %v125
    %v127 = vmul.f32 %v124, %v126
    %v128 = vadd.f32 %v124, %v127
    %vm129 = vweird.f32 %v123
    %vm130 = vweird.f32 %v124
    %vm131 = vmor %vm129, %vm130
    %v132 = vsel %vm131, %v124, %v128
    %v133 = vand.u32 2147483647, %v123
    %vm134 = vcmp.eq.f32.partialorder %v133, 8.507059e+37
    %v135 = vand.u32 %v123, 2147483648
    %v136 = vor.u32 1.1754944e-38, %v135
    %v137 = vsel %vm134, %v136, %v132
    %v138 = vmul.f32 1.0, %v137
    %v139 = vtanh.pop %v119
    %v140 = vmul.f32 %v138, 0.0
    %142 = vrot.lane.b32.xlu0 %v139, 80
    %v143 = vpop.permute.xlu0 %142
    %v145 = vmul.f32 %v138, %v143
    %147 = vrot.lane.b32.xlu0 %v145, 16
    %v148 = vpop.permute.xlu0 %147
    %v150 = vadd.f32 %v140, %v148
    %v151 = vtanh.pop %v150
    %153 = vrot.lane.b32.xlu0 %v151, 16
    %v154 = vpop.permute.xlu0 %153
    %v156 = vmul.f32 %v138, %v154
    %v157 = vsel %vm69, 0.0, %v150
    %v159 = vperm.slane %v51, 0
    %vm161 = vcmask 261120
    %v163 = vsel %vm161, %v157, 0
    %165 = vmatpush.msra.mxu0 0.0
    %166 = vmatpush.msra.mxu0 0.0
    %167 = vmatpush.msra.mxu0 0.0
    %168 = vmatpush.msra.mxu0 0.0
    %169 = vmatpush.msra.mxu0 0.0
    %170 = vmatpush.msra.mxu0 0.0
    %171 = vmatpush.msra.mxu0 0.0
    %172 = vmatpush.msra.mxu0 0.0
    %173 = vmatpush.msra.mxu0 0.0
    %174 = vmatpush.msra.mxu0 0.0
    %175 = vmatpush.msra.mxu0 0.0
    %176 = vmatpush.msra.mxu0 0.0
    %177 = vmatpush.msra.mxu0 %v50
    %178 = vmatpush.msra.mxu0 %v49
    %179 = vmatpush.msra.mxu0 %v48
    %180 = vmatpush.msra.mxu0 %v47
    %181 = vmatmul.f32.gmra.mxu0 %v163
    %v182 = vpop.f32.mrf.mxu0
    %v183 = vadd.f32 %v159, %v182
    %184 = vdwg.mxu0
    %v185 = vmax.f32 %v183, 0.0
    %v187 = vperm.slane %v54, 0
    %v190 = vsel %vm69, %v185, 0
    %192 = vmatpush.msra.mxu0 0.0
    %193 = vmatpush.msra.mxu0 0.0
    %194 = vmatpush.msra.mxu0 0.0
    %195 = vmatpush.msra.mxu0 0.0
    %196 = vmatpush.msra.mxu0 0.0
    %197 = vmatpush.msra.mxu0 0.0
    %198 = vmatpush.msra.mxu0 0.0
    %199 = vmatpush.msra.mxu0 0.0
    %200 = vmatpush.msra.mxu0 0.0
    %201 = vmatpush.msra.mxu0 0.0
    %202 = vmatpush.msra.mxu0 0.0
    %203 = vmatpush.msra.mxu0 0.0
    %204 = vmatpush.msra.mxu0 0.0
    %205 = vmatpush.msra.mxu0 0.0
    %206 = vmatpush.msra.mxu0 %v53
    %207 = vmatpush.msra.mxu0 %v52
    %208 = vmatmul.f32.gmra.mxu0 %v190
    %v209 = vpop.f32.mrf.mxu0
    %v210 = vadd.f32 %v187, %v209
    %211 = vdwg.mxu0
    %vm212 = vcmask 257024
    %v213 = vsel %vm212, %v210, -inf
    %214 = vmax.xlane.f32.xlu0 %v213
    %v215 = vpop.xlane.xlu0 %214
    %v216 = vsub.f32 %v210, %v215
    %v217 = vmul.f32 %v216, 1.442695
    %v218 = vpow.pop %v217
    %v219 = vsel %vm212, %v218, 0.0
    %220 = vadd.xlane.f32.xlu0 %v219
    %v221 = vpop.xlane.xlu0 %220
    %v222 = vrcp.pop %v221
    %v223 = vmul.f32 %v218, %v222
    %v224 = vmul.f32 %v223, %v157
    %v225 = vsel %vm161, %v224, 0.0
    %v227 = vperm.slane %v60, 0
    %vm229 = vcmask 326656
    %v231 = vsel %vm229, %v225, 0
    %233 = vmatpush.msra.mxu0 0.0
    %234 = vmatpush.msra.mxu0 0.0
    %235 = vmatpush.msra.mxu0 0.0
    %236 = vmatpush.msra.mxu0 0.0
    %237 = vmatpush.msra.mxu0 0.0
    %238 = vmatpush.msra.mxu0 0.0
    %239 = vmatpush.msra.mxu0 0.0
    %240 = vmatpush.msra.mxu0 0.0
    %241 = vmatpush.msra.mxu0 0.0
    %242 = vmatpush.msra.mxu0 0.0
    %243 = vmatpush.msra.mxu0 0.0
    %244 = vmatpush.msra.mxu0 %v59
    %245 = vmatpush.msra.mxu0 %v58
    %246 = vmatpush.msra.mxu0 %v57
    %247 = vmatpush.msra.mxu0 %v56
    %248 = vmatpush.msra.mxu0 %v55
    %249 = vmatmul.f32.gmra.mxu0 %v231
    %v250 = vpop.f32.mrf.mxu0
    %v251 = vadd.f32 %v227, %v250
    %252 = vdwg.mxu0
    %v253 = vmax.f32 %v251, 0.0
    %v255 = vperm.slane %v67, 0
    %vm257 = vcmask 392192
    %v259 = vsel %vm257, %v253, 0
    %261 = vmatpush.msra.mxu0 0.0
    %262 = vmatpush.msra.mxu0 0.0
    %263 = vmatpush.msra.mxu0 0.0
    %264 = vmatpush.msra.mxu0 0.0
    %265 = vmatpush.msra.mxu0 0.0
    %266 = vmatpush.msra.mxu0 0.0
    %267 = vmatpush.msra.mxu0 0.0
    %268 = vmatpush.msra.mxu0 0.0
    %269 = vmatpush.msra.mxu0 0.0
    %270 = vmatpush.msra.mxu0 0.0
    %271 = vmatpush.msra.mxu0 %v66
    %272 = vmatpush.msra.mxu0 %v65
    %273 = vmatpush.msra.mxu0 %v64
    %274 = vmatpush.msra.mxu0 %v63
    %275 = vmatpush.msra.mxu0 %v62
    %276 = vmatpush.msra.mxu0 %v61
    %277 = vmatmul.f32.gmra.mxu0 %v259
    %v278 = vpop.f32.mrf.mxu0
    %v279 = vadd.f32 %v255, %v278
    %280 = vdwg.mxu0
    %v281 = vtanh.pop %v279
    %v282 = vxor.u32 %v279, 2147483648
    %v283 = vmul.f32 %v282, 1.442695
    %v284 = vpow.pop %v283
    %v285 = vadd.f32 %v284, 1.0
    %v286 = vrcp.pop %v285
    %v287 = vmul.f32 %v285, %v286
    %v288 = vsub.f32 1.0, %v287
    %v289 = vmul.f32 %v286, %v288
    %v290 = vadd.f32 %v286, %v289
    %vm291 = vweird.f32 %v285
    %vm292 = vweird.f32 %v286
    %vm293 = vmor %vm291, %vm292
    %v294 = vsel %vm293, %v286, %v290
    %v295 = vand.u32 2147483647, %v285
    %vm296 = vcmp.eq.f32.partialorder %v295, 8.507059e+37
    %v297 = vand.u32 %v285, 2147483648
    %v298 = vor.u32 1.1754944e-38, %v297
    %v299 = vsel %vm296, %v298, %v294
    %v300 = vmul.f32 1.0, %v299
    %v301 = vmul.f32 %v300, 0.0
    %303 = vrot.lane.b32.xlu0 %v281, 16
    %v304 = vpop.permute.xlu0 %303
    %v306 = vmul.f32 %v300, %v304
    %308 = vrot.lane.b32.xlu0 %v306, 120
    %v309 = vpop.permute.xlu0 %308
    %v311 = vadd.f32 %v301, %v309
    %s312 = scalar_lea.vmem %s0, 4
    %v313 = vld [vmem:[%s312] sm:$0xf]
    %315 = vrot.lane.b32.xlu0 %v156, 96
    %v316 = vpop.permute.xlu0 %315
    %v317 = vsel %vm69, %v316, 0
    %319 = vmatpush.msra.mxu0 0.0
    %320 = vmatpush.msra.mxu0 0.0
    %321 = vmatpush.msra.mxu0 0.0
    %322 = vmatpush.msra.mxu0 0.0
    %323 = vmatpush.msra.mxu0 0.0
    %324 = vmatpush.msra.mxu0 0.0
    %325 = vmatpush.msra.mxu0 0.0
    %326 = vmatpush.msra.mxu0 0.0
    %327 = vmatpush.msra.mxu0 0.0
    %328 = vmatpush.msra.mxu0 0.0
    %329 = vmatpush.msra.mxu0 0.0
    %330 = vmatpush.msra.mxu0 0.0
    %331 = vmatpush.msra.mxu0 0.0
    %332 = vmatpush.msra.mxu0 0.0
    %333 = vmatpush.msra.mxu0 %v45
    %334 = vmatpush.msra.mxu0 %v44
    %335 = vmatmul.f32.gmra.mxu0 %v317
    %v336 = vpop.f32.mrf.mxu0
    %v337 = vadd.f32 0.0, %v336
    %338 = vdwg.mxu0
    %v340 = vsel %vm69, %v313, 0
    %342 = vmatpush.msra.mxu0 0.0
    %343 = vmatpush.msra.mxu0 0.0
    %344 = vmatpush.msra.mxu0 0.0
    %345 = vmatpush.msra.mxu0 0.0
    %346 = vmatpush.msra.mxu0 0.0
    %347 = vmatpush.msra.mxu0 0.0
    %348 = vmatpush.msra.mxu0 0.0
    %349 = vmatpush.msra.mxu0 0.0
    %350 = vmatpush.msra.mxu0 0.0
    %351 = vmatpush.msra.mxu0 0.0
    %352 = vmatpush.msra.mxu0 0.0
    %353 = vmatpush.msra.mxu0 0.0
    %354 = vmatpush.msra.mxu0 0.0
    %355 = vmatpush.msra.mxu0 0.0
    %356 = vmatpush.msra.mxu0 %v43
    %357 = vmatpush.msra.mxu0 %v42
    %358 = vmatmul.f32.gmra.mxu0 %v340
    %v359 = vpop.f32.mrf.mxu0
    %v360 = vadd.f32 %v337, %v359
    %361 = vdwg.mxu0
    %v362 = vadd.f32 %v360, %v117
    %v363 = vxor.u32 %v362, 2147483648
    %v364 = vmul.f32 %v363, 1.442695
    %v365 = vpow.pop %v364
    %v366 = vadd.f32 %v365, 1.0
    %v367 = vrcp.pop %v366
    %v368 = vmul.f32 %v366, %v367
    %v369 = vsub.f32 1.0, %v368
    %v370 = vmul.f32 %v367, %v369
    %v371 = vadd.f32 %v367, %v370
    %vm372 = vweird.f32 %v366
    %vm373 = vweird.f32 %v367
    %vm374 = vmor %vm372, %vm373
    %v375 = vsel %vm374, %v367, %v371
    %v376 = vand.u32 2147483647, %v366
    %vm377 = vcmp.eq.f32.partialorder %v376, 8.507059e+37
    %v378 = vand.u32 %v366, 2147483648
    %v379 = vor.u32 1.1754944e-38, %v378
    %v380 = vsel %vm377, %v379, %v375
    %v381 = vmul.f32 1.0, %v380
    %v382 = vtanh.pop %v362
    %v383 = vmul.f32 %v381, %v150
    %385 = vrot.lane.b32.xlu0 %v382, 80
    %v386 = vpop.permute.xlu0 %385
    %v388 = vmul.f32 %v381, %v386
    %390 = vrot.lane.b32.xlu0 %v388, 16
    %v391 = vpop.permute.xlu0 %390
    %v393 = vadd.f32 %v383, %v391
    %v394 = vtanh.pop %v393
    %396 = vrot.lane.b32.xlu0 %v394, 16
    %v397 = vpop.permute.xlu0 %396
    %v399 = vmul.f32 %v381, %v397
    %401 = vrot.lane.b32.xlu0 %v150, 112
    %v402 = vpop.permute.xlu0 %401
    %v404 = vsel %vm69, %v402, %v393
    %v406 = vsel %vm161, %v404, 0
    %408 = vmatpush.msra.mxu0 0.0
    %409 = vmatpush.msra.mxu0 0.0
    %410 = vmatpush.msra.mxu0 0.0
    %411 = vmatpush.msra.mxu0 0.0
    %412 = vmatpush.msra.mxu0 0.0
    %413 = vmatpush.msra.mxu0 0.0
    %414 = vmatpush.msra.mxu0 0.0
    %415 = vmatpush.msra.mxu0 0.0
    %416 = vmatpush.msra.mxu0 0.0
    %417 = vmatpush.msra.mxu0 0.0
    %418 = vmatpush.msra.mxu0 0.0
    %419 = vmatpush.msra.mxu0 0.0
    %420 = vmatpush.msra.mxu0 %v50
    %421 = vmatpush.msra.mxu0 %v49
    %422 = vmatpush.msra.mxu0 %v48
    %423 = vmatpush.msra.mxu0 %v47
    %424 = vmatmul.f32.gmra.mxu0 %v406
    %v425 = vpop.f32.mrf.mxu0
    %v426 = vadd.f32 %v159, %v425
    %427 = vdwg.mxu0
    %v428 = vmax.f32 %v426, 0.0
    %v430 = vsel %vm69, %v428, 0
    %432 = vmatpush.msra.mxu0 0.0
    %433 = vmatpush.msra.mxu0 0.0
    %434 = vmatpush.msra.mxu0 0.0
    %435 = vmatpush.msra.mxu0 0.0
    %436 = vmatpush.msra.mxu0 0.0
    %437 = vmatpush.msra.mxu0 0.0
    %438 = vmatpush.msra.mxu0 0.0
    %439 = vmatpush.msra.mxu0 0.0
    %440 = vmatpush.msra.mxu0 0.0
    %441 = vmatpush.msra.mxu0 0.0
    %442 = vmatpush.msra.mxu0 0.0
    %443 = vmatpush.msra.mxu0 0.0
    %444 = vmatpush.msra.mxu0 0.0
    %445 = vmatpush.msra.mxu0 0.0
    %446 = vmatpush.msra.mxu0 %v53
    %447 = vmatpush.msra.mxu0 %v52
    %448 = vmatmul.f32.gmra.mxu0 %v430
    %v449 = vpop.f32.mrf.mxu0
    %v450 = vadd.f32 %v187, %v449
    %451 = vdwg.mxu0
    %v452 = vsel %vm212, %v450, -inf
    %453 = vmax.xlane.f32.xlu0 %v452
    %v454 = vpop.xlane.xlu0 %453
    %v455 = vsub.f32 %v450, %v454
    %v456 = vmul.f32 %v455, 1.442695
    %v457 = vpow.pop %v456
    %v458 = vsel %vm212, %v457, 0.0
    %459 = vadd.xlane.f32.xlu0 %v458
    %v460 = vpop.xlane.xlu0 %459
    %v461 = vrcp.pop %v460
    %v462 = vmul.f32 %v457, %v461
    %v463 = vmul.f32 %v462, %v404
    %465 = vrot.lane.b32.xlu0 %v311, 24
    %v466 = vpop.permute.xlu0 %465
    %v468 = vsel %vm161, %v463, %v466
    %v470 = vsel %vm229, %v468, 0
    %472 = vmatpush.msra.mxu0 0.0
    %473 = vmatpush.msra.mxu0 0.0
    %474 = vmatpush.msra.mxu0 0.0
    %475 = vmatpush.msra.mxu0 0.0
    %476 = vmatpush.msra.mxu0 0.0
    %477 = vmatpush.msra.mxu0 0.0
    %478 = vmatpush.msra.mxu0 0.0
    %479 = vmatpush.msra.mxu0 0.0
    %480 = vmatpush.msra.mxu0 0.0
    %481 = vmatpush.msra.mxu0 0.0
    %482 = vmatpush.msra.mxu0 0.0
    %483 = vmatpush.msra.mxu0 %v59
    %484 = vmatpush.msra.mxu0 %v58
    %485 = vmatpush.msra.mxu0 %v57
    %486 = vmatpush.msra.mxu0 %v56
    %487 = vmatpush.msra.mxu0 %v55
    %488 = vmatmul.f32.gmra.mxu0 %v470
    %v489 = vpop.f32.mrf.mxu0
    %v490 = vadd.f32 %v227, %v489
    %491 = vdwg.mxu0
    %v492 = vmax.f32 %v490, 0.0
    %v494 = vsel %vm257, %v492, 0
    %496 = vmatpush.msra.mxu0 0.0
    %497 = vmatpush.msra.mxu0 0.0
    %498 = vmatpush.msra.mxu0 0.0
    %499 = vmatpush.msra.mxu0 0.0
    %500 = vmatpush.msra.mxu0 0.0
    %501 = vmatpush.msra.mxu0 0.0
    %502 = vmatpush.msra.mxu0 0.0
    %503 = vmatpush.msra.mxu0 0.0
    %504 = vmatpush.msra.mxu0 0.0
    %505 = vmatpush.msra.mxu0 0.0
    %506 = vmatpush.msra.mxu0 %v66
    %507 = vmatpush.msra.mxu0 %v65
    %508 = vmatpush.msra.mxu0 %v64
    %509 = vmatpush.msra.mxu0 %v63
    %510 = vmatpush.msra.mxu0 %v62
    %511 = vmatpush.msra.mxu0 %v61
    %512 = vmatmul.f32.gmra.mxu0 %v494
    %v513 = vpop.f32.mrf.mxu0
    %v514 = vadd.f32 %v255, %v513
    %515 = vdwg.mxu0
    %v516 = vtanh.pop %v514
    %v517 = vxor.u32 %v514, 2147483648
    %v518 = vmul.f32 %v517, 1.442695
    %v519 = vpow.pop %v518
    %v520 = vadd.f32 %v519, 1.0
    %v521 = vrcp.pop %v520
    %v522 = vmul.f32 %v520, %v521
    %v523 = vsub.f32 1.0, %v522
    %v524 = vmul.f32 %v521, %v523
    %v525 = vadd.f32 %v521, %v524
    %vm526 = vweird.f32 %v520
    %vm527 = vweird.f32 %v521
    %vm528 = vmor %vm526, %vm527
    %v529 = vsel %vm528, %v521, %v525
    %v530 = vand.u32 2147483647, %v520
    %vm531 = vcmp.eq.f32.partialorder %v530, 8.507059e+37
    %v532 = vand.u32 %v520, 2147483648
    %v533 = vor.u32 1.1754944e-38, %v532
    %v534 = vsel %vm531, %v533, %v529
    %v535 = vmul.f32 1.0, %v534
    %v536 = vmul.f32 %v535, %v311
    %538 = vrot.lane.b32.xlu0 %v516, 16
    %v539 = vpop.permute.xlu0 %538
    %v541 = vmul.f32 %v535, %v539
    %543 = vrot.lane.b32.xlu0 %v541, 120
    %v544 = vpop.permute.xlu0 %543
    %v546 = vadd.f32 %v536, %v544
    %s547 = scalar_lea.vmem %s0, 8
    %v548 = vld [vmem:[%s547] sm:$0xf]
    %550 = vrot.lane.b32.xlu0 %v399, 96
    %v551 = vpop.permute.xlu0 %550
    %v552 = vsel %vm69, %v551, 0
    %554 = vmatpush.msra.mxu0 0.0
    %555 = vmatpush.msra.mxu0 0.0
    %556 = vmatpush.msra.mxu0 0.0
    %557 = vmatpush.msra.mxu0 0.0
    %558 = vmatpush.msra.mxu0 0.0
    %559 = vmatpush.msra.mxu0 0.0
    %560 = vmatpush.msra.mxu0 0.0
    %561 = vmatpush.msra.mxu0 0.0
    %562 = vmatpush.msra.mxu0 0.0
    %563 = vmatpush.msra.mxu0 0.0
    %564 = vmatpush.msra.mxu0 0.0
    %565 = vmatpush.msra.mxu0 0.0
    %566 = vmatpush.msra.mxu0 0.0
    %567 = vmatpush.msra.mxu0 0.0
    %568 = vmatpush.msra.mxu0 %v45
    %569 = vmatpush.msra.mxu0 %v44
    %570 = vmatmul.f32.gmra.mxu0 %v552
    %v571 = vpop.f32.mrf.mxu0
    %v572 = vadd.f32 0.0, %v571
    %573 = vdwg.mxu0
    %v575 = vsel %vm69, %v548, 0
    %577 = vmatpush.msra.mxu0 0.0
    %578 = vmatpush.msra.mxu0 0.0
    %579 = vmatpush.msra.mxu0 0.0
    %580 = vmatpush.msra.mxu0 0.0
    %581 = vmatpush.msra.mxu0 0.0
    %582 = vmatpush.msra.mxu0 0.0
    %583 = vmatpush.msra.mxu0 0.0
    %584 = vmatpush.msra.mxu0 0.0
    %585 = vmatpush.msra.mxu0 0.0
    %586 = vmatpush.msra.mxu0 0.0
    %587 = vmatpush.msra.mxu0 0.0
    %588 = vmatpush.msra.mxu0 0.0
    %589 = vmatpush.msra.mxu0 0.0
    %590 = vmatpush.msra.mxu0 0.0
    %591 = vmatpush.msra.mxu0 %v43
    %592 = vmatpush.msra.mxu0 %v42
    %593 = vmatmul.f32.gmra.mxu0 %v575
    %v594 = vpop.f32.mrf.mxu0
    %v595 = vadd.f32 %v572, %v594
    %596 = vdwg.mxu0
    %v597 = vadd.f32 %v595, %v117
    %v598 = vxor.u32 %v597, 2147483648
    %v599 = vmul.f32 %v598, 1.442695
    %v600 = vpow.pop %v599
    %v601 = vadd.f32 %v600, 1.0
    %v602 = vrcp.pop %v601
    %v603 = vmul.f32 %v601, %v602
    %v604 = vsub.f32 1.0, %v603
    %v605 = vmul.f32 %v602, %v604
    %v606 = vadd.f32 %v602, %v605
    %vm607 = vweird.f32 %v601
    %vm608 = vweird.f32 %v602
    %vm609 = vmor %vm607, %vm608
    %v610 = vsel %vm609, %v602, %v606
    %v611 = vand.u32 2147483647, %v601
    %vm612 = vcmp.eq.f32.partialorder %v611, 8.507059e+37
    %v613 = vand.u32 %v601, 2147483648
    %v614 = vor.u32 1.1754944e-38, %v613
    %v615 = vsel %vm612, %v614, %v610
    %v616 = vmul.f32 1.0, %v615
    %v617 = vtanh.pop %v597
    %v618 = vmul.f32 %v616, %v393
    %620 = vrot.lane.b32.xlu0 %v617, 80
    %v621 = vpop.permute.xlu0 %620
    %v623 = vmul.f32 %v616, %v621
    %625 = vrot.lane.b32.xlu0 %v623, 16
    %v626 = vpop.permute.xlu0 %625
    %v628 = vadd.f32 %v618, %v626
    %v629 = vtanh.pop %v628
    %631 = vrot.lane.b32.xlu0 %v629, 16
    %v632 = vpop.permute.xlu0 %631
    %v634 = vmul.f32 %v616, %v632
    %636 = vrot.lane.b32.xlu0 %v393, 112
    %v637 = vpop.permute.xlu0 %636
    %v639 = vsel %vm69, %v637, %v628
    %v641 = vsel %vm161, %v639, 0
    %643 = vmatpush.msra.mxu0 0.0
    %644 = vmatpush.msra.mxu0 0.0
    %645 = vmatpush.msra.mxu0 0.0
    %646 = vmatpush.msra.mxu0 0.0
    %647 = vmatpush.msra.mxu0 0.0
    %648 = vmatpush.msra.mxu0 0.0
    %649 = vmatpush.msra.mxu0 0.0
    %650 = vmatpush.msra.mxu0 0.0
    %651 = vmatpush.msra.mxu0 0.0
    %652 = vmatpush.msra.mxu0 0.0
    %653 = vmatpush.msra.mxu0 0.0
    %654 = vmatpush.msra.mxu0 0.0
    %655 = vmatpush.msra.mxu0 %v50
    %656 = vmatpush.msra.mxu0 %v49
    %657 = vmatpush.msra.mxu0 %v48
    %658 = vmatpush.msra.mxu0 %v47
    %659 = vmatmul.f32.gmra.mxu0 %v641
    %v660 = vpop.f32.mrf.mxu0
    %v661 = vadd.f32 %v159, %v660
    %662 = vdwg.mxu0
    %v663 = vmax.f32 %v661, 0.0
    %v665 = vsel %vm69, %v663, 0
    %667 = vmatpush.msra.mxu0 0.0
    %668 = vmatpush.msra.mxu0 0.0
    %669 = vmatpush.msra.mxu0 0.0
    %670 = vmatpush.msra.mxu0 0.0
    %671 = vmatpush.msra.mxu0 0.0
    %672 = vmatpush.msra.mxu0 0.0
    %673 = vmatpush.msra.mxu0 0.0
    %674 = vmatpush.msra.mxu0 0.0
    %675 = vmatpush.msra.mxu0 0.0
    %676 = vmatpush.msra.mxu0 0.0
    %677 = vmatpush.msra.mxu0 0.0
    %678 = vmatpush.msra.mxu0 0.0
    %679 = vmatpush.msra.mxu0 0.0
    %680 = vmatpush.msra.mxu0 0.0
    %681 = vmatpush.msra.mxu0 %v53
    %682 = vmatpush.msra.mxu0 %v52
    %683 = vmatmul.f32.gmra.mxu0 %v665
    %v684 = vpop.f32.mrf.mxu0
    %v685 = vadd.f32 %v187, %v684
    %686 = vdwg.mxu0
    %v687 = vsel %vm212, %v685, -inf
    %688 = vmax.xlane.f32.xlu0 %v687
    %v689 = vpop.xlane.xlu0 %688
    %v690 = vsub.f32 %v685, %v689
    %v691 = vmul.f32 %v690, 1.442695
    %v692 = vpow.pop %v691
    %v693 = vsel %vm212, %v692, 0.0
    %694 = vadd.xlane.f32.xlu0 %v693
    %v695 = vpop.xlane.xlu0 %694
    %v696 = vrcp.pop %v695
    %v697 = vmul.f32 %v692, %v696
    %v698 = vmul.f32 %v697, %v639
    %700 = vrot.lane.b32.xlu0 %v546, 24
    %v701 = vpop.permute.xlu0 %700
    %v703 = vsel %vm161, %v698, %v701
    %v705 = vsel %vm229, %v703, 0
    %707 = vmatpush.msra.mxu0 0.0
    %708 = vmatpush.msra.mxu0 0.0
    %709 = vmatpush.msra.mxu0 0.0
    %710 = vmatpush.msra.mxu0 0.0
    %711 = vmatpush.msra.mxu0 0.0
    %712 = vmatpush.msra.mxu0 0.0
    %713 = vmatpush.msra.mxu0 0.0
    %714 = vmatpush.msra.mxu0 0.0
    %715 = vmatpush.msra.mxu0 0.0
    %716 = vmatpush.msra.mxu0 0.0
    %717 = vmatpush.msra.mxu0 0.0
    %718 = vmatpush.msra.mxu0 %v59
    %719 = vmatpush.msra.mxu0 %v58
    %720 = vmatpush.msra.mxu0 %v57
    %721 = vmatpush.msra.mxu0 %v56
    %722 = vmatpush.msra.mxu0 %v55
    %723 = vmatmul.f32.gmra.mxu0 %v705
    %v724 = vpop.f32.mrf.mxu0
    %v725 = vadd.f32 %v227, %v724
    %726 = vdwg.mxu0
    %v727 = vmax.f32 %v725, 0.0
    %v729 = vsel %vm257, %v727, 0
    %731 = vmatpush.msra.mxu0 0.0
    %732 = vmatpush.msra.mxu0 0.0
    %733 = vmatpush.msra.mxu0 0.0
    %734 = vmatpush.msra.mxu0 0.0
    %735 = vmatpush.msra.mxu0 0.0
    %736 = vmatpush.msra.mxu0 0.0
    %737 = vmatpush.msra.mxu0 0.0
    %738 = vmatpush.msra.mxu0 0.0
    %739 = vmatpush.msra.mxu0 0.0
    %740 = vmatpush.msra.mxu0 0.0
    %741 = vmatpush.msra.mxu0 %v66
    %742 = vmatpush.msra.mxu0 %v65
    %743 = vmatpush.msra.mxu0 %v64
    %744 = vmatpush.msra.mxu0 %v63
    %745 = vmatpush.msra.mxu0 %v62
    %746 = vmatpush.msra.mxu0 %v61
    %747 = vmatmul.f32.gmra.mxu0 %v729
    %v748 = vpop.f32.mrf.mxu0
    %v749 = vadd.f32 %v255, %v748
    %750 = vdwg.mxu0
    %v751 = vtanh.pop %v749
    %v752 = vxor.u32 %v749, 2147483648
    %v753 = vmul.f32 %v752, 1.442695
    %v754 = vpow.pop %v753
    %v755 = vadd.f32 %v754, 1.0
    %v756 = vrcp.pop %v755
    %v757 = vmul.f32 %v755, %v756
    %v758 = vsub.f32 1.0, %v757
    %v759 = vmul.f32 %v756, %v758
    %v760 = vadd.f32 %v756, %v759
    %vm761 = vweird.f32 %v755
    %vm762 = vweird.f32 %v756
    %vm763 = vmor %vm761, %vm762
    %v764 = vsel %vm763, %v756, %v760
    %v765 = vand.u32 2147483647, %v755
    %vm766 = vcmp.eq.f32.partialorder %v765, 8.507059e+37
    %v767 = vand.u32 %v755, 2147483648
    %v768 = vor.u32 1.1754944e-38, %v767
    %v769 = vsel %vm766, %v768, %v764
    %v770 = vmul.f32 1.0, %v769
    %v771 = vmul.f32 %v770, %v546
    %773 = vrot.lane.b32.xlu0 %v751, 16
    %v774 = vpop.permute.xlu0 %773
    %v776 = vmul.f32 %v770, %v774
    %778 = vrot.lane.b32.xlu0 %v776, 120
    %v779 = vpop.permute.xlu0 %778
    %v781 = vadd.f32 %v771, %v779
    %s782 = scalar_lea.vmem %s0, 12
    %v783 = vld [vmem:[%s782] sm:$0xf]
    %785 = vrot.lane.b32.xlu0 %v634, 96
    %v786 = vpop.permute.xlu0 %785
    %v787 = vsel %vm69, %v786, 0
    %789 = vmatpush.msra.mxu0 0.0
    %790 = vmatpush.msra.mxu0 0.0
    %791 = vmatpush.msra.mxu0 0.0
    %792 = vmatpush.msra.mxu0 0.0
    %793 = vmatpush.msra.mxu0 0.0
    %794 = vmatpush.msra.mxu0 0.0
    %795 = vmatpush.msra.mxu0 0.0
    %796 = vmatpush.msra.mxu0 0.0
    %797 = vmatpush.msra.mxu0 0.0
    %798 = vmatpush.msra.mxu0 0.0
    %799 = vmatpush.msra.mxu0 0.0
    %800 = vmatpush.msra.mxu0 0.0
    %801 = vmatpush.msra.mxu0 0.0
    %802 = vmatpush.msra.mxu0 0.0
    %803 = vmatpush.msra.mxu0 %v45
    %804 = vmatpush.msra.mxu0 %v44
    %805 = vmatmul.f32.gmra.mxu0 %v787
    %v806 = vpop.f32.mrf.mxu0
    %v807 = vadd.f32 0.0, %v806
    %808 = vdwg.mxu0
    %v810 = vsel %vm69, %v783, 0
    %812 = vmatpush.msra.mxu0 0.0
    %813 = vmatpush.msra.mxu0 0.0
    %814 = vmatpush.msra.mxu0 0.0
    %815 = vmatpush.msra.mxu0 0.0
    %816 = vmatpush.msra.mxu0 0.0
    %817 = vmatpush.msra.mxu0 0.0
    %818 = vmatpush.msra.mxu0 0.0
    %819 = vmatpush.msra.mxu0 0.0
    %820 = vmatpush.msra.mxu0 0.0
    %821 = vmatpush.msra.mxu0 0.0
    %822 = vmatpush.msra.mxu0 0.0
    %823 = vmatpush.msra.mxu0 0.0
    %824 = vmatpush.msra.mxu0 0.0
    %825 = vmatpush.msra.mxu0 0.0
    %826 = vmatpush.msra.mxu0 %v43
    %827 = vmatpush.msra.mxu0 %v42
    %828 = vmatmul.f32.gmra.mxu0 %v810
    %v829 = vpop.f32.mrf.mxu0
    %v830 = vadd.f32 %v807, %v829
    %831 = vdwg.mxu0
    %v832 = vadd.f32 %v830, %v117
    %v833 = vxor.u32 %v832, 2147483648
    %v834 = vmul.f32 %v833, 1.442695
    %v835 = vpow.pop %v834
    %v836 = vadd.f32 %v835, 1.0
    %v837 = vrcp.pop %v836
    %v838 = vmul.f32 %v836, %v837
    %v839 = vsub.f32 1.0, %v838
    %v840 = vmul.f32 %v837, %v839
    %v841 = vadd.f32 %v837, %v840
    %vm842 = vweird.f32 %v836
    %vm843 = vweird.f32 %v837
    %vm844 = vmor %vm842, %vm843
    %v845 = vsel %vm844, %v837, %v841
    %v846 = vand.u32 2147483647, %v836
    %vm847 = vcmp.eq.f32.partialorder %v846, 8.507059e+37
    %v848 = vand.u32 %v836, 2147483648
    %v849 = vor.u32 1.1754944e-38, %v848
    %v850 = vsel %vm847, %v849, %v845
    %v851 = vmul.f32 1.0, %v850
    %v852 = vtanh.pop %v832
    %v853 = vmul.f32 %v851, %v628
    %855 = vrot.lane.b32.xlu0 %v852, 80
    %v856 = vpop.permute.xlu0 %855
    %v858 = vmul.f32 %v851, %v856
    %860 = vrot.lane.b32.xlu0 %v858, 16
    %v861 = vpop.permute.xlu0 %860
    %v863 = vadd.f32 %v853, %v861
    %v864 = vtanh.pop %v863
    %866 = vrot.lane.b32.xlu0 %v864, 16
    %v867 = vpop.permute.xlu0 %866
    %v869 = vmul.f32 %v851, %v867
    %871 = vrot.lane.b32.xlu0 %v628, 112
    %v872 = vpop.permute.xlu0 %871
    %v874 = vsel %vm69, %v872, %v863
    %v876 = vsel %vm161, %v874, 0
    %878 = vmatpush.msra.mxu0 0.0
    %879 = vmatpush.msra.mxu0 0.0
    %880 = vmatpush.msra.mxu0 0.0
    %881 = vmatpush.msra.mxu0 0.0
    %882 = vmatpush.msra.mxu0 0.0
    %883 = vmatpush.msra.mxu0 0.0
    %884 = vmatpush.msra.mxu0 0.0
    %885 = vmatpush.msra.mxu0 0.0
    %886 = vmatpush.msra.mxu0 0.0
    %887 = vmatpush.msra.mxu0 0.0
    %888 = vmatpush.msra.mxu0 0.0
    %889 = vmatpush.msra.mxu0 0.0
    %890 = vmatpush.msra.mxu0 %v50
    %891 = vmatpush.msra.mxu0 %v49
    %892 = vmatpush.msra.mxu0 %v48
    %893 = vmatpush.msra.mxu0 %v47
    %894 = vmatmul.f32.gmra.mxu0 %v876
    %v895 = vpop.f32.mrf.mxu0
    %v896 = vadd.f32 %v159, %v895
    %897 = vdwg.mxu0
    %v898 = vmax.f32 %v896, 0.0
    %v900 = vsel %vm69, %v898, 0
    %902 = vmatpush.msra.mxu0 0.0
    %903 = vmatpush.msra.mxu0 0.0
    %904 = vmatpush.msra.mxu0 0.0
    %905 = vmatpush.msra.mxu0 0.0
    %906 = vmatpush.msra.mxu0 0.0
    %907 = vmatpush.msra.mxu0 0.0
    %908 = vmatpush.msra.mxu0 0.0
    %909 = vmatpush.msra.mxu0 0.0
    %910 = vmatpush.msra.mxu0 0.0
    %911 = vmatpush.msra.mxu0 0.0
    %912 = vmatpush.msra.mxu0 0.0
    %913 = vmatpush.msra.mxu0 0.0
    %914 = vmatpush.msra.mxu0 0.0
    %915 = vmatpush.msra.mxu0 0.0
    %916 = vmatpush.msra.mxu0 %v53
    %917 = vmatpush.msra.mxu0 %v52
    %918 = vmatmul.f32.gmra.mxu0 %v900
    %v919 = vpop.f32.mrf.mxu0
    %v920 = vadd.f32 %v187, %v919
    %921 = vdwg.mxu0
    %v922 = vsel %vm212, %v920, -inf
    %923 = vmax.xlane.f32.xlu0 %v922
    %v924 = vpop.xlane.xlu0 %923
    %v925 = vsub.f32 %v920, %v924
    %v926 = vmul.f32 %v925, 1.442695
    %v927 = vpow.pop %v926
    %v928 = vsel %vm212, %v927, 0.0
    %929 = vadd.xlane.f32.xlu0 %v928
    %v930 = vpop.xlane.xlu0 %929
    %v931 = vrcp.pop %v930
    %v932 = vmul.f32 %v927, %v931
    %v933 = vmul.f32 %v932, %v874
    %935 = vrot.lane.b32.xlu0 %v781, 24
    %v936 = vpop.permute.xlu0 %935
    %v938 = vsel %vm161, %v933, %v936
    %v940 = vsel %vm229, %v938, 0
    %942 = vmatpush.msra.mxu0 0.0
    %943 = vmatpush.msra.mxu0 0.0
    %944 = vmatpush.msra.mxu0 0.0
    %945 = vmatpush.msra.mxu0 0.0
    %946 = vmatpush.msra.mxu0 0.0
    %947 = vmatpush.msra.mxu0 0.0
    %948 = vmatpush.msra.mxu0 0.0
    %949 = vmatpush.msra.mxu0 0.0
    %950 = vmatpush.msra.mxu0 0.0
    %951 = vmatpush.msra.mxu0 0.0
    %952 = vmatpush.msra.mxu0 0.0
    %953 = vmatpush.msra.mxu0 %v59
    %954 = vmatpush.msra.mxu0 %v58
    %955 = vmatpush.msra.mxu0 %v57
    %956 = vmatpush.msra.mxu0 %v56
    %957 = vmatpush.msra.mxu0 %v55
    %958 = vmatmul.f32.gmra.mxu0 %v940
    %v959 = vpop.f32.mrf.mxu0
    %v960 = vadd.f32 %v227, %v959
    %961 = vdwg.mxu0
    %v962 = vmax.f32 %v960, 0.0
    %v964 = vsel %vm257, %v962, 0
    %966 = vmatpush.msra.mxu0 0.0
    %967 = vmatpush.msra.mxu0 0.0
    %968 = vmatpush.msra.mxu0 0.0
    %969 = vmatpush.msra.mxu0 0.0
    %970 = vmatpush.msra.mxu0 0.0
    %971 = vmatpush.msra.mxu0 0.0
    %972 = vmatpush.msra.mxu0 0.0
    %973 = vmatpush.msra.mxu0 0.0
    %974 = vmatpush.msra.mxu0 0.0
    %975 = vmatpush.msra.mxu0 0.0
    %976 = vmatpush.msra.mxu0 %v66
    %977 = vmatpush.msra.mxu0 %v65
    %978 = vmatpush.msra.mxu0 %v64
    %979 = vmatpush.msra.mxu0 %v63
    %980 = vmatpush.msra.mxu0 %v62
    %981 = vmatpush.msra.mxu0 %v61
    %982 = vmatmul.f32.gmra.mxu0 %v964
    %v983 = vpop.f32.mrf.mxu0
    %v984 = vadd.f32 %v255, %v983
    %985 = vdwg.mxu0
    %v986 = vtanh.pop %v984
    %v987 = vxor.u32 %v984, 2147483648
    %v988 = vmul.f32 %v987, 1.442695
    %v989 = vpow.pop %v988
    %v990 = vadd.f32 %v989, 1.0
    %v991 = vrcp.pop %v990
    %v992 = vmul.f32 %v990, %v991
    %v993 = vsub.f32 1.0, %v992
    %v994 = vmul.f32 %v991, %v993
    %v995 = vadd.f32 %v991, %v994
    %vm996 = vweird.f32 %v990
    %vm997 = vweird.f32 %v991
    %vm998 = vmor %vm996, %vm997
    %v999 = vsel %vm998, %v991, %v995
    %v1000 = vand.u32 2147483647, %v990
    %vm1001 = vcmp.eq.f32.partialorder %v1000, 8.507059e+37
    %v1002 = vand.u32 %v990, 2147483648
    %v1003 = vor.u32 1.1754944e-38, %v1002
    %v1004 = vsel %vm1001, %v1003, %v999
    %v1005 = vmul.f32 1.0, %v1004
    %v1006 = vmul.f32 %v1005, %v781
    %1008 = vrot.lane.b32.xlu0 %v986, 16
    %v1009 = vpop.permute.xlu0 %1008
    %v1011 = vmul.f32 %v1005, %v1009
    %1013 = vrot.lane.b32.xlu0 %v1011, 120
    %v1014 = vpop.permute.xlu0 %1013
    %v1016 = vadd.f32 %v1006, %v1014
    %s1017 = scalar_lea.vmem %s0, 16
    %v1018 = vld [vmem:[%s1017] sm:$0xf]
    %1020 = vrot.lane.b32.xlu0 %v869, 96
    %v1021 = vpop.permute.xlu0 %1020
    %v1022 = vsel %vm69, %v1021, 0
    %1024 = vmatpush.msra.mxu0 0.0
    %1025 = vmatpush.msra.mxu0 0.0
    %1026 = vmatpush.msra.mxu0 0.0
    %1027 = vmatpush.msra.mxu0 0.0
    %1028 = vmatpush.msra.mxu0 0.0
    %1029 = vmatpush.msra.mxu0 0.0
    %1030 = vmatpush.msra.mxu0 0.0
    %1031 = vmatpush.msra.mxu0 0.0
    %1032 = vmatpush.msra.mxu0 0.0
    %1033 = vmatpush.msra.mxu0 0.0
    %1034 = vmatpush.msra.mxu0 0.0
    %1035 = vmatpush.msra.mxu0 0.0
    %1036 = vmatpush.msra.mxu0 0.0
    %1037 = vmatpush.msra.mxu0 0.0
    %1038 = vmatpush.msra.mxu0 %v45
    %1039 = vmatpush.msra.mxu0 %v44
    %1040 = vmatmul.f32.gmra.mxu0 %v1022
    %v1041 = vpop.f32.mrf.mxu0
    %v1042 = vadd.f32 0.0, %v1041
    %1043 = vdwg.mxu0
    %v1045 = vsel %vm69, %v1018, 0
    %1047 = vmatpush.msra.mxu0 0.0
    %1048 = vmatpush.msra.mxu0 0.0
    %1049 = vmatpush.msra.mxu0 0.0
    %1050 = vmatpush.msra.mxu0 0.0
    %1051 = vmatpush.msra.mxu0 0.0
    %1052 = vmatpush.msra.mxu0 0.0
    %1053 = vmatpush.msra.mxu0 0.0
    %1054 = vmatpush.msra.mxu0 0.0
    %1055 = vmatpush.msra.mxu0 0.0
    %1056 = vmatpush.msra.mxu0 0.0
    %1057 = vmatpush.msra.mxu0 0.0
    %1058 = vmatpush.msra.mxu0 0.0
    %1059 = vmatpush.msra.mxu0 0.0
    %1060 = vmatpush.msra.mxu0 0.0
    %1061 = vmatpush.msra.mxu0 %v43
    %1062 = vmatpush.msra.mxu0 %v42
    %1063 = vmatmul.f32.gmra.mxu0 %v1045
    %v1064 = vpop.f32.mrf.mxu0
    %v1065 = vadd.f32 %v1042, %v1064
    %1066 = vdwg.mxu0
    %v1067 = vadd.f32 %v1065, %v117
    %v1068 = vxor.u32 %v1067, 2147483648
    %v1069 = vmul.f32 %v1068, 1.442695
    %v1070 = vpow.pop %v1069
    %v1071 = vadd.f32 %v1070, 1.0
    %v1072 = vrcp.pop %v1071
    %v1073 = vmul.f32 %v1071, %v1072
    %v1074 = vsub.f32 1.0, %v1073
    %v1075 = vmul.f32 %v1072, %v1074
    %v1076 = vadd.f32 %v1072, %v1075
    %vm1077 = vweird.f32 %v1071
    %vm1078 = vweird.f32 %v1072
    %vm1079 = vmor %vm1077, %vm1078
    %v1080 = vsel %vm1079, %v1072, %v1076
    %v1081 = vand.u32 2147483647, %v1071
    %vm1082 = vcmp.eq.f32.partialorder %v1081, 8.507059e+37
    %v1083 = vand.u32 %v1071, 2147483648
    %v1084 = vor.u32 1.1754944e-38, %v1083
    %v1085 = vsel %vm1082, %v1084, %v1080
    %v1086 = vmul.f32 1.0, %v1085
    %v1087 = vtanh.pop %v1067
    %v1088 = vmul.f32 %v1086, %v863
    %1090 = vrot.lane.b32.xlu0 %v1087, 80
    %v1091 = vpop.permute.xlu0 %1090
    %v1093 = vmul.f32 %v1086, %v1091
    %1095 = vrot.lane.b32.xlu0 %v1093, 16
    %v1096 = vpop.permute.xlu0 %1095
    %v1098 = vadd.f32 %v1088, %v1096
    %v1099 = vtanh.pop %v1098
    %1101 = vrot.lane.b32.xlu0 %v1099, 16
    %v1102 = vpop.permute.xlu0 %1101
    %v1104 = vmul.f32 %v1086, %v1102
    %1106 = vrot.lane.b32.xlu0 %v863, 112
    %v1107 = vpop.permute.xlu0 %1106
    %v1109 = vsel %vm69, %v1107, %v1098
    %v1111 = vsel %vm161, %v1109, 0
    %1113 = vmatpush.msra.mxu0 0.0
    %1114 = vmatpush.msra.mxu0 0.0
    %1115 = vmatpush.msra.mxu0 0.0
    %1116 = vmatpush.msra.mxu0 0.0
    %1117 = vmatpush.msra.mxu0 0.0
    %1118 = vmatpush.msra.mxu0 0.0
    %1119 = vmatpush.msra.mxu0 0.0
    %1120 = vmatpush.msra.mxu0 0.0
    %1121 = vmatpush.msra.mxu0 0.0
    %1122 = vmatpush.msra.mxu0 0.0
    %1123 = vmatpush.msra.mxu0 0.0
    %1124 = vmatpush.msra.mxu0 0.0
    %1125 = vmatpush.msra.mxu0 %v50
    %1126 = vmatpush.msra.mxu0 %v49
    %1127 = vmatpush.msra.mxu0 %v48
    %1128 = vmatpush.msra.mxu0 %v47
    %1129 = vmatmul.f32.gmra.mxu0 %v1111
    %v1130 = vpop.f32.mrf.mxu0
    %v1131 = vadd.f32 %v159, %v1130
    %1132 = vdwg.mxu0
    %v1133 = vmax.f32 %v1131, 0.0
    %v1135 = vsel %vm69, %v1133, 0
    %1137 = vmatpush.msra.mxu0 0.0
    %1138 = vmatpush.msra.mxu0 0.0
    %1139 = vmatpush.msra.mxu0 0.0
    %1140 = vmatpush.msra.mxu0 0.0
    %1141 = vmatpush.msra.mxu0 0.0
    %1142 = vmatpush.msra.mxu0 0.0
    %1143 = vmatpush.msra.mxu0 0.0
    %1144 = vmatpush.msra.mxu0 0.0
    %1145 = vmatpush.msra.mxu0 0.0
    %1146 = vmatpush.msra.mxu0 0.0
    %1147 = vmatpush.msra.mxu0 0.0
    %1148 = vmatpush.msra.mxu0 0.0
    %1149 = vmatpush.msra.mxu0 0.0
    %1150 = vmatpush.msra.mxu0 0.0
    %1151 = vmatpush.msra.mxu0 %v53
    %1152 = vmatpush.msra.mxu0 %v52
    %1153 = vmatmul.f32.gmra.mxu0 %v1135
    %v1154 = vpop.f32.mrf.mxu0
    %v1155 = vadd.f32 %v187, %v1154
    %1156 = vdwg.mxu0
    %v1157 = vsel %vm212, %v1155, -inf
    %1158 = vmax.xlane.f32.xlu0 %v1157
    %v1159 = vpop.xlane.xlu0 %1158
    %v1160 = vsub.f32 %v1155, %v1159
    %v1161 = vmul.f32 %v1160, 1.442695
    %v1162 = vpow.pop %v1161
    %v1163 = vsel %vm212, %v1162, 0.0
    %1164 = vadd.xlane.f32.xlu0 %v1163
    %v1165 = vpop.xlane.xlu0 %1164
    %v1166 = vrcp.pop %v1165
    %v1167 = vmul.f32 %v1162, %v1166
    %v1168 = vmul.f32 %v1167, %v1109
    %1170 = vrot.lane.b32.xlu0 %v1016, 24
    %v1171 = vpop.permute.xlu0 %1170
    %v1173 = vsel %vm161, %v1168, %v1171
    %v1175 = vsel %vm229, %v1173, 0
    %1177 = vmatpush.msra.mxu0 0.0
    %1178 = vmatpush.msra.mxu0 0.0
    %1179 = vmatpush.msra.mxu0 0.0
    %1180 = vmatpush.msra.mxu0 0.0
    %1181 = vmatpush.msra.mxu0 0.0
    %1182 = vmatpush.msra.mxu0 0.0
    %1183 = vmatpush.msra.mxu0 0.0
    %1184 = vmatpush.msra.mxu0 0.0
    %1185 = vmatpush.msra.mxu0 0.0
    %1186 = vmatpush.msra.mxu0 0.0
    %1187 = vmatpush.msra.mxu0 0.0
    %1188 = vmatpush.msra.mxu0 %v59
    %1189 = vmatpush.msra.mxu0 %v58
    %1190 = vmatpush.msra.mxu0 %v57
    %1191 = vmatpush.msra.mxu0 %v56
    %1192 = vmatpush.msra.mxu0 %v55
    %1193 = vmatmul.f32.gmra.mxu0 %v1175
    %v1194 = vpop.f32.mrf.mxu0
    %v1195 = vadd.f32 %v227, %v1194
    %1196 = vdwg.mxu0
    %v1197 = vmax.f32 %v1195, 0.0
    %v1199 = vsel %vm257, %v1197, 0
    %1201 = vmatpush.msra.mxu0 0.0
    %1202 = vmatpush.msra.mxu0 0.0
    %1203 = vmatpush.msra.mxu0 0.0
    %1204 = vmatpush.msra.mxu0 0.0
    %1205 = vmatpush.msra.mxu0 0.0
    %1206 = vmatpush.msra.mxu0 0.0
    %1207 = vmatpush.msra.mxu0 0.0
    %1208 = vmatpush.msra.mxu0 0.0
    %1209 = vmatpush.msra.mxu0 0.0
    %1210 = vmatpush.msra.mxu0 0.0
    %1211 = vmatpush.msra.mxu0 %v66
    %1212 = vmatpush.msra.mxu0 %v65
    %1213 = vmatpush.msra.mxu0 %v64
    %1214 = vmatpush.msra.mxu0 %v63
    %1215 = vmatpush.msra.mxu0 %v62
    %1216 = vmatpush.msra.mxu0 %v61
    %1217 = vmatmul.f32.gmra.mxu0 %v1199
    %v1218 = vpop.f32.mrf.mxu0
    %v1219 = vadd.f32 %v255, %v1218
    %1220 = vdwg.mxu0
    %v1221 = vtanh.pop %v1219
    %v1222 = vxor.u32 %v1219, 2147483648
    %v1223 = vmul.f32 %v1222, 1.442695
    %v1224 = vpow.pop %v1223
    %v1225 = vadd.f32 %v1224, 1.0
    %v1226 = vrcp.pop %v1225
    %v1227 = vmul.f32 %v1225, %v1226
    %v1228 = vsub.f32 1.0, %v1227
    %v1229 = vmul.f32 %v1226, %v1228
    %v1230 = vadd.f32 %v1226, %v1229
    %vm1231 = vweird.f32 %v1225
    %vm1232 = vweird.f32 %v1226
    %vm1233 = vmor %vm1231, %vm1232
    %v1234 = vsel %vm1233, %v1226, %v1230
    %v1235 = vand.u32 2147483647, %v1225
    %vm1236 = vcmp.eq.f32.partialorder %v1235, 8.507059e+37
    %v1237 = vand.u32 %v1225, 2147483648
    %v1238 = vor.u32 1.1754944e-38, %v1237
    %v1239 = vsel %vm1236, %v1238, %v1234
    %v1240 = vmul.f32 1.0, %v1239
    %v1241 = vmul.f32 %v1240, %v1016
    %1243 = vrot.lane.b32.xlu0 %v1221, 16
    %v1244 = vpop.permute.xlu0 %1243
    %v1246 = vmul.f32 %v1240, %v1244
    %1248 = vrot.lane.b32.xlu0 %v1246, 120
    %v1249 = vpop.permute.xlu0 %1248
    %v1251 = vadd.f32 %v1241, %v1249
    %s1252 = scalar_lea.vmem %s0, 20
    %v1253 = vld [vmem:[%s1252] sm:$0xf]
    %1255 = vrot.lane.b32.xlu0 %v1104, 96
    %v1256 = vpop.permute.xlu0 %1255
    %v1257 = vsel %vm69, %v1256, 0
    %1259 = vmatpush.msra.mxu0 0.0
    %1260 = vmatpush.msra.mxu0 0.0
    %1261 = vmatpush.msra.mxu0 0.0
    %1262 = vmatpush.msra.mxu0 0.0
    %1263 = vmatpush.msra.mxu0 0.0
    %1264 = vmatpush.msra.mxu0 0.0
    %1265 = vmatpush.msra.mxu0 0.0
    %1266 = vmatpush.msra.mxu0 0.0
    %1267 = vmatpush.msra.mxu0 0.0
    %1268 = vmatpush.msra.mxu0 0.0
    %1269 = vmatpush.msra.mxu0 0.0
    %1270 = vmatpush.msra.mxu0 0.0
    %1271 = vmatpush.msra.mxu0 0.0
    %1272 = vmatpush.msra.mxu0 0.0
    %1273 = vmatpush.msra.mxu0 %v45
    %1274 = vmatpush.msra.mxu0 %v44
    %1275 = vmatmul.f32.gmra.mxu0 %v1257
    %v1276 = vpop.f32.mrf.mxu0
    %v1277 = vadd.f32 0.0, %v1276
    %1278 = vdwg.mxu0
    %v1280 = vsel %vm69, %v1253, 0
    %1282 = vmatpush.msra.mxu0 0.0
    %1283 = vmatpush.msra.mxu0 0.0
    %1284 = vmatpush.msra.mxu0 0.0
    %1285 = vmatpush.msra.mxu0 0.0
    %1286 = vmatpush.msra.mxu0 0.0
    %1287 = vmatpush.msra.mxu0 0.0
    %1288 = vmatpush.msra.mxu0 0.0
    %1289 = vmatpush.msra.mxu0 0.0
    %1290 = vmatpush.msra.mxu0 0.0
    %1291 = vmatpush.msra.mxu0 0.0
    %1292 = vmatpush.msra.mxu0 0.0
    %1293 = vmatpush.msra.mxu0 0.0
    %1294 = vmatpush.msra.mxu0 0.0
    %1295 = vmatpush.msra.mxu0 0.0
    %1296 = vmatpush.msra.mxu0 %v43
    %1297 = vmatpush.msra.mxu0 %v42
    %1298 = vmatmul.f32.gmra.mxu0 %v1280
    %v1299 = vpop.f32.mrf.mxu0
    %v1300 = vadd.f32 %v1277, %v1299
    %1301 = vdwg.mxu0
    %v1302 = vadd.f32 %v1300, %v117
    %v1303 = vxor.u32 %v1302, 2147483648
    %v1304 = vmul.f32 %v1303, 1.442695
    %v1305 = vpow.pop %v1304
    %v1306 = vadd.f32 %v1305, 1.0
    %v1307 = vrcp.pop %v1306
    %v1308 = vmul.f32 %v1306, %v1307
    %v1309 = vsub.f32 1.0, %v1308
    %v1310 = vmul.f32 %v1307, %v1309
    %v1311 = vadd.f32 %v1307, %v1310
    %vm1312 = vweird.f32 %v1306
    %vm1313 = vweird.f32 %v1307
    %vm1314 = vmor %vm1312, %vm1313
    %v1315 = vsel %vm1314, %v1307, %v1311
    %v1316 = vand.u32 2147483647, %v1306
    %vm1317 = vcmp.eq.f32.partialorder %v1316, 8.507059e+37
    %v1318 = vand.u32 %v1306, 2147483648
    %v1319 = vor.u32 1.1754944e-38, %v1318
    %v1320 = vsel %vm1317, %v1319, %v1315
    %v1321 = vmul.f32 1.0, %v1320
    %v1322 = vtanh.pop %v1302
    %v1323 = vmul.f32 %v1321, %v1098
    %1325 = vrot.lane.b32.xlu0 %v1322, 80
    %v1326 = vpop.permute.xlu0 %1325
    %v1328 = vmul.f32 %v1321, %v1326
    %1330 = vrot.lane.b32.xlu0 %v1328, 16
    %v1331 = vpop.permute.xlu0 %1330
    %v1333 = vadd.f32 %v1323, %v1331
    %v1334 = vtanh.pop %v1333
    %1336 = vrot.lane.b32.xlu0 %v1334, 16
    %v1337 = vpop.permute.xlu0 %1336
    %v1339 = vmul.f32 %v1321, %v1337
    %1341 = vrot.lane.b32.xlu0 %v1098, 112
    %v1342 = vpop.permute.xlu0 %1341
    %v1344 = vsel %vm69, %v1342, %v1333
    %v1346 = vsel %vm161, %v1344, 0
    %1348 = vmatpush.msra.mxu0 0.0
    %1349 = vmatpush.msra.mxu0 0.0
    %1350 = vmatpush.msra.mxu0 0.0
    %1351 = vmatpush.msra.mxu0 0.0
    %1352 = vmatpush.msra.mxu0 0.0
    %1353 = vmatpush.msra.mxu0 0.0
    %1354 = vmatpush.msra.mxu0 0.0
    %1355 = vmatpush.msra.mxu0 0.0
    %1356 = vmatpush.msra.mxu0 0.0
    %1357 = vmatpush.msra.mxu0 0.0
    %1358 = vmatpush.msra.mxu0 0.0
    %1359 = vmatpush.msra.mxu0 0.0
    %1360 = vmatpush.msra.mxu0 %v50
    %1361 = vmatpush.msra.mxu0 %v49
    %1362 = vmatpush.msra.mxu0 %v48
    %1363 = vmatpush.msra.mxu0 %v47
    %1364 = vmatmul.f32.gmra.mxu0 %v1346
    %v1365 = vpop.f32.mrf.mxu0
    %v1366 = vadd.f32 %v159, %v1365
    %1367 = vdwg.mxu0
    %v1368 = vmax.f32 %v1366, 0.0
    %v1370 = vsel %vm69, %v1368, 0
    %1372 = vmatpush.msra.mxu0 0.0
    %1373 = vmatpush.msra.mxu0 0.0
    %1374 = vmatpush.msra.mxu0 0.0
    %1375 = vmatpush.msra.mxu0 0.0
    %1376 = vmatpush.msra.mxu0 0.0
    %1377 = vmatpush.msra.mxu0 0.0
    %1378 = vmatpush.msra.mxu0 0.0
    %1379 = vmatpush.msra.mxu0 0.0
    %1380 = vmatpush.msra.mxu0 0.0
    %1381 = vmatpush.msra.mxu0 0.0
    %1382 = vmatpush.msra.mxu0 0.0
    %1383 = vmatpush.msra.mxu0 0.0
    %1384 = vmatpush.msra.mxu0 0.0
    %1385 = vmatpush.msra.mxu0 0.0
    %1386 = vmatpush.msra.mxu0 %v53
    %1387 = vmatpush.msra.mxu0 %v52
    %1388 = vmatmul.f32.gmra.mxu0 %v1370
    %v1389 = vpop.f32.mrf.mxu0
    %v1390 = vadd.f32 %v187, %v1389
    %1391 = vdwg.mxu0
    %v1392 = vsel %vm212, %v1390, -inf
    %1393 = vmax.xlane.f32.xlu0 %v1392
    %v1394 = vpop.xlane.xlu0 %1393
    %v1395 = vsub.f32 %v1390, %v1394
    %v1396 = vmul.f32 %v1395, 1.442695
    %v1397 = vpow.pop %v1396
    %v1398 = vsel %vm212, %v1397, 0.0
    %1399 = vadd.xlane.f32.xlu0 %v1398
    %v1400 = vpop.xlane.xlu0 %1399
    %v1401 = vrcp.pop %v1400
    %v1402 = vmul.f32 %v1397, %v1401
    %v1403 = vmul.f32 %v1402, %v1344
    %1405 = vrot.lane.b32.xlu0 %v1251, 24
    %v1406 = vpop.permute.xlu0 %1405
    %v1408 = vsel %vm161, %v1403, %v1406
    %v1410 = vsel %vm229, %v1408, 0
    %1412 = vmatpush.msra.mxu0 0.0
    %1413 = vmatpush.msra.mxu0 0.0
    %1414 = vmatpush.msra.mxu0 0.0
    %1415 = vmatpush.msra.mxu0 0.0
    %1416 = vmatpush.msra.mxu0 0.0
    %1417 = vmatpush.msra.mxu0 0.0
    %1418 = vmatpush.msra.mxu0 0.0
    %1419 = vmatpush.msra.mxu0 0.0
    %1420 = vmatpush.msra.mxu0 0.0
    %1421 = vmatpush.msra.mxu0 0.0
    %1422 = vmatpush.msra.mxu0 0.0
    %1423 = vmatpush.msra.mxu0 %v59
    %1424 = vmatpush.msra.mxu0 %v58
    %1425 = vmatpush.msra.mxu0 %v57
    %1426 = vmatpush.msra.mxu0 %v56
    %1427 = vmatpush.msra.mxu0 %v55
    %1428 = vmatmul.f32.gmra.mxu0 %v1410
    %v1429 = vpop.f32.mrf.mxu0
    %v1430 = vadd.f32 %v227, %v1429
    %1431 = vdwg.mxu0
    %v1432 = vmax.f32 %v1430, 0.0
    %v1434 = vsel %vm257, %v1432, 0
    %1436 = vmatpush.msra.mxu0 0.0
    %1437 = vmatpush.msra.mxu0 0.0
    %1438 = vmatpush.msra.mxu0 0.0
    %1439 = vmatpush.msra.mxu0 0.0
    %1440 = vmatpush.msra.mxu0 0.0
    %1441 = vmatpush.msra.mxu0 0.0
    %1442 = vmatpush.msra.mxu0 0.0
    %1443 = vmatpush.msra.mxu0 0.0
    %1444 = vmatpush.msra.mxu0 0.0
    %1445 = vmatpush.msra.mxu0 0.0
    %1446 = vmatpush.msra.mxu0 %v66
    %1447 = vmatpush.msra.mxu0 %v65
    %1448 = vmatpush.msra.mxu0 %v64
    %1449 = vmatpush.msra.mxu0 %v63
    %1450 = vmatpush.msra.mxu0 %v62
    %1451 = vmatpush.msra.mxu0 %v61
    %1452 = vmatmul.f32.gmra.mxu0 %v1434
    %v1453 = vpop.f32.mrf.mxu0
    %v1454 = vadd.f32 %v255, %v1453
    %1455 = vdwg.mxu0
    %v1456 = vtanh.pop %v1454
    %v1457 = vxor.u32 %v1454, 2147483648
    %v1458 = vmul.f32 %v1457, 1.442695
    %v1459 = vpow.pop %v1458
    %v1460 = vadd.f32 %v1459, 1.0
    %v1461 = vrcp.pop %v1460
    %v1462 = vmul.f32 %v1460, %v1461
    %v1463 = vsub.f32 1.0, %v1462
    %v1464 = vmul.f32 %v1461, %v1463
    %v1465 = vadd.f32 %v1461, %v1464
    %vm1466 = vweird.f32 %v1460
    %vm1467 = vweird.f32 %v1461
    %vm1468 = vmor %vm1466, %vm1467
    %v1469 = vsel %vm1468, %v1461, %v1465
    %v1470 = vand.u32 2147483647, %v1460
    %vm1471 = vcmp.eq.f32.partialorder %v1470, 8.507059e+37
    %v1472 = vand.u32 %v1460, 2147483648
    %v1473 = vor.u32 1.1754944e-38, %v1472
    %v1474 = vsel %vm1471, %v1473, %v1469
    %v1475 = vmul.f32 1.0, %v1474
    %v1476 = vmul.f32 %v1475, %v1251
    %1478 = vrot.lane.b32.xlu0 %v1456, 16
    %v1479 = vpop.permute.xlu0 %1478
    %v1481 = vmul.f32 %v1475, %v1479
    %1483 = vrot.lane.b32.xlu0 %v1481, 120
    %v1484 = vpop.permute.xlu0 %1483
    %v1486 = vadd.f32 %v1476, %v1484
    %s1487 = scalar_lea.vmem %s0, 24
    %v1488 = vld [vmem:[%s1487] sm:$0xf]
    %1490 = vrot.lane.b32.xlu0 %v1339, 96
    %v1491 = vpop.permute.xlu0 %1490
    %v1492 = vsel %vm69, %v1491, 0
    %1494 = vmatpush.msra.mxu0 0.0
    %1495 = vmatpush.msra.mxu0 0.0
    %1496 = vmatpush.msra.mxu0 0.0
    %1497 = vmatpush.msra.mxu0 0.0
    %1498 = vmatpush.msra.mxu0 0.0
    %1499 = vmatpush.msra.mxu0 0.0
    %1500 = vmatpush.msra.mxu0 0.0
    %1501 = vmatpush.msra.mxu0 0.0
    %1502 = vmatpush.msra.mxu0 0.0
    %1503 = vmatpush.msra.mxu0 0.0
    %1504 = vmatpush.msra.mxu0 0.0
    %1505 = vmatpush.msra.mxu0 0.0
    %1506 = vmatpush.msra.mxu0 0.0
    %1507 = vmatpush.msra.mxu0 0.0
    %1508 = vmatpush.msra.mxu0 %v45
    %1509 = vmatpush.msra.mxu0 %v44
    %1510 = vmatmul.f32.gmra.mxu0 %v1492
    %v1511 = vpop.f32.mrf.mxu0
    %v1512 = vadd.f32 0.0, %v1511
    %1513 = vdwg.mxu0
    %v1515 = vsel %vm69, %v1488, 0
    %1517 = vmatpush.msra.mxu0 0.0
    %1518 = vmatpush.msra.mxu0 0.0
    %1519 = vmatpush.msra.mxu0 0.0
    %1520 = vmatpush.msra.mxu0 0.0
    %1521 = vmatpush.msra.mxu0 0.0
    %1522 = vmatpush.msra.mxu0 0.0
    %1523 = vmatpush.msra.mxu0 0.0
    %1524 = vmatpush.msra.mxu0 0.0
    %1525 = vmatpush.msra.mxu0 0.0
    %1526 = vmatpush.msra.mxu0 0.0
    %1527 = vmatpush.msra.mxu0 0.0
    %1528 = vmatpush.msra.mxu0 0.0
    %1529 = vmatpush.msra.mxu0 0.0
    %1530 = vmatpush.msra.mxu0 0.0
    %1531 = vmatpush.msra.mxu0 %v43
    %1532 = vmatpush.msra.mxu0 %v42
    %1533 = vmatmul.f32.gmra.mxu0 %v1515
    %v1534 = vpop.f32.mrf.mxu0
    %v1535 = vadd.f32 %v1512, %v1534
    %1536 = vdwg.mxu0
    %v1537 = vadd.f32 %v1535, %v117
    %v1538 = vxor.u32 %v1537, 2147483648
    %v1539 = vmul.f32 %v1538, 1.442695
    %v1540 = vpow.pop %v1539
    %v1541 = vadd.f32 %v1540, 1.0
    %v1542 = vrcp.pop %v1541
    %v1543 = vmul.f32 %v1541, %v1542
    %v1544 = vsub.f32 1.0, %v1543
    %v1545 = vmul.f32 %v1542, %v1544
    %v1546 = vadd.f32 %v1542, %v1545
    %vm1547 = vweird.f32 %v1541
    %vm1548 = vweird.f32 %v1542
    %vm1549 = vmor %vm1547, %vm1548
    %v1550 = vsel %vm1549, %v1542, %v1546
    %v1551 = vand.u32 2147483647, %v1541
    %vm1552 = vcmp.eq.f32.partialorder %v1551, 8.507059e+37
    %v1553 = vand.u32 %v1541, 2147483648
    %v1554 = vor.u32 1.1754944e-38, %v1553
    %v1555 = vsel %vm1552, %v1554, %v1550
    %v1556 = vmul.f32 1.0, %v1555
    %v1557 = vtanh.pop %v1537
    %v1558 = vmul.f32 %v1556, %v1333
    %1560 = vrot.lane.b32.xlu0 %v1557, 80
    %v1561 = vpop.permute.xlu0 %1560
    %v1563 = vmul.f32 %v1556, %v1561
    %1565 = vrot.lane.b32.xlu0 %v1563, 16
    %v1566 = vpop.permute.xlu0 %1565
    %v1568 = vadd.f32 %v1558, %v1566
    %v1569 = vtanh.pop %v1568
    %1571 = vrot.lane.b32.xlu0 %v1569, 16
    %v1572 = vpop.permute.xlu0 %1571
    %v1574 = vmul.f32 %v1556, %v1572
    %1576 = vrot.lane.b32.xlu0 %v1333, 112
    %v1577 = vpop.permute.xlu0 %1576
    %v1579 = vsel %vm69, %v1577, %v1568
    %v1581 = vsel %vm161, %v1579, 0
    %1583 = vmatpush.msra.mxu0 0.0
    %1584 = vmatpush.msra.mxu0 0.0
    %1585 = vmatpush.msra.mxu0 0.0
    %1586 = vmatpush.msra.mxu0 0.0
    %1587 = vmatpush.msra.mxu0 0.0
    %1588 = vmatpush.msra.mxu0 0.0
    %1589 = vmatpush.msra.mxu0 0.0
    %1590 = vmatpush.msra.mxu0 0.0
    %1591 = vmatpush.msra.mxu0 0.0
    %1592 = vmatpush.msra.mxu0 0.0
    %1593 = vmatpush.msra.mxu0 0.0
    %1594 = vmatpush.msra.mxu0 0.0
    %1595 = vmatpush.msra.mxu0 %v50
    %1596 = vmatpush.msra.mxu0 %v49
    %1597 = vmatpush.msra.mxu0 %v48
    %1598 = vmatpush.msra.mxu0 %v47
    %1599 = vmatmul.f32.gmra.mxu0 %v1581
    %v1600 = vpop.f32.mrf.mxu0
    %v1601 = vadd.f32 %v159, %v1600
    %1602 = vdwg.mxu0
    %v1603 = vmax.f32 %v1601, 0.0
    %v1605 = vsel %vm69, %v1603, 0
    %1607 = vmatpush.msra.mxu0 0.0
    %1608 = vmatpush.msra.mxu0 0.0
    %1609 = vmatpush.msra.mxu0 0.0
    %1610 = vmatpush.msra.mxu0 0.0
    %1611 = vmatpush.msra.mxu0 0.0
    %1612 = vmatpush.msra.mxu0 0.0
    %1613 = vmatpush.msra.mxu0 0.0
    %1614 = vmatpush.msra.mxu0 0.0
    %1615 = vmatpush.msra.mxu0 0.0
    %1616 = vmatpush.msra.mxu0 0.0
    %1617 = vmatpush.msra.mxu0 0.0
    %1618 = vmatpush.msra.mxu0 0.0
    %1619 = vmatpush.msra.mxu0 0.0
    %1620 = vmatpush.msra.mxu0 0.0
    %1621 = vmatpush.msra.mxu0 %v53
    %1622 = vmatpush.msra.mxu0 %v52
    %1623 = vmatmul.f32.gmra.mxu0 %v1605
    %v1624 = vpop.f32.mrf.mxu0
    %v1625 = vadd.f32 %v187, %v1624
    %1626 = vdwg.mxu0
    %v1627 = vsel %vm212, %v1625, -inf
    %1628 = vmax.xlane.f32.xlu0 %v1627
    %v1629 = vpop.xlane.xlu0 %1628
    %v1630 = vsub.f32 %v1625, %v1629
    %v1631 = vmul.f32 %v1630, 1.442695
    %v1632 = vpow.pop %v1631
    %v1633 = vsel %vm212, %v1632, 0.0
    %1634 = vadd.xlane.f32.xlu0 %v1633
    %v1635 = vpop.xlane.xlu0 %1634
    %v1636 = vrcp.pop %v1635
    %v1637 = vmul.f32 %v1632, %v1636
    %v1638 = vmul.f32 %v1637, %v1579
    %1640 = vrot.lane.b32.xlu0 %v1486, 24
    %v1641 = vpop.permute.xlu0 %1640
    %v1643 = vsel %vm161, %v1638, %v1641
    %v1645 = vsel %vm229, %v1643, 0
    %1647 = vmatpush.msra.mxu0 0.0
    %1648 = vmatpush.msra.mxu0 0.0
    %1649 = vmatpush.msra.mxu0 0.0
    %1650 = vmatpush.msra.mxu0 0.0
    %1651 = vmatpush.msra.mxu0 0.0
    %1652 = vmatpush.msra.mxu0 0.0
    %1653 = vmatpush.msra.mxu0 0.0
    %1654 = vmatpush.msra.mxu0 0.0
    %1655 = vmatpush.msra.mxu0 0.0
    %1656 = vmatpush.msra.mxu0 0.0
    %1657 = vmatpush.msra.mxu0 0.0
    %1658 = vmatpush.msra.mxu0 %v59
    %1659 = vmatpush.msra.mxu0 %v58
    %1660 = vmatpush.msra.mxu0 %v57
    %1661 = vmatpush.msra.mxu0 %v56
    %1662 = vmatpush.msra.mxu0 %v55
    %1663 = vmatmul.f32.gmra.mxu0 %v1645
    %v1664 = vpop.f32.mrf.mxu0
    %v1665 = vadd.f32 %v227, %v1664
    %1666 = vdwg.mxu0
    %v1667 = vmax.f32 %v1665, 0.0
    %v1669 = vsel %vm257, %v1667, 0
    %1671 = vmatpush.msra.mxu0 0.0
    %1672 = vmatpush.msra.mxu0 0.0
    %1673 = vmatpush.msra.mxu0 0.0
    %1674 = vmatpush.msra.mxu0 0.0
    %1675 = vmatpush.msra.mxu0 0.0
    %1676 = vmatpush.msra.mxu0 0.0
    %1677 = vmatpush.msra.mxu0 0.0
    %1678 = vmatpush.msra.mxu0 0.0
    %1679 = vmatpush.msra.mxu0 0.0
    %1680 = vmatpush.msra.mxu0 0.0
    %1681 = vmatpush.msra.mxu0 %v66
    %1682 = vmatpush.msra.mxu0 %v65
    %1683 = vmatpush.msra.mxu0 %v64
    %1684 = vmatpush.msra.mxu0 %v63
    %1685 = vmatpush.msra.mxu0 %v62
    %1686 = vmatpush.msra.mxu0 %v61
    %1687 = vmatmul.f32.gmra.mxu0 %v1669
    %v1688 = vpop.f32.mrf.mxu0
    %v1689 = vadd.f32 %v255, %v1688
    %1690 = vdwg.mxu0
    %v1691 = vtanh.pop %v1689
    %v1692 = vxor.u32 %v1689, 2147483648
    %v1693 = vmul.f32 %v1692, 1.442695
    %v1694 = vpow.pop %v1693
    %v1695 = vadd.f32 %v1694, 1.0
    %v1696 = vrcp.pop %v1695
    %v1697 = vmul.f32 %v1695, %v1696
    %v1698 = vsub.f32 1.0, %v1697
    %v1699 = vmul.f32 %v1696, %v1698
    %v1700 = vadd.f32 %v1696, %v1699
    %vm1701 = vweird.f32 %v1695
    %vm1702 = vweird.f32 %v1696
    %vm1703 = vmor %vm1701, %vm1702
    %v1704 = vsel %vm1703, %v1696, %v1700
    %v1705 = vand.u32 2147483647, %v1695
    %vm1706 = vcmp.eq.f32.partialorder %v1705, 8.507059e+37
    %v1707 = vand.u32 %v1695, 2147483648
    %v1708 = vor.u32 1.1754944e-38, %v1707
    %v1709 = vsel %vm1706, %v1708, %v1704
    %v1710 = vmul.f32 1.0, %v1709
    %v1711 = vmul.f32 %v1710, %v1486
    %1713 = vrot.lane.b32.xlu0 %v1691, 16
    %v1714 = vpop.permute.xlu0 %1713
    %v1716 = vmul.f32 %v1710, %v1714
    %1718 = vrot.lane.b32.xlu0 %v1716, 120
    %v1719 = vpop.permute.xlu0 %1718
    %v1721 = vadd.f32 %v1711, %v1719
    %s1722 = scalar_lea.vmem %s0, 28
    %v1723 = vld [vmem:[%s1722] sm:$0xf]
    %1725 = vrot.lane.b32.xlu0 %v1574, 96
    %v1726 = vpop.permute.xlu0 %1725
    %v1727 = vsel %vm69, %v1726, 0
    %1729 = vmatpush.msra.mxu0 0.0
    %1730 = vmatpush.msra.mxu0 0.0
    %1731 = vmatpush.msra.mxu0 0.0
    %1732 = vmatpush.msra.mxu0 0.0
    %1733 = vmatpush.msra.mxu0 0.0
    %1734 = vmatpush.msra.mxu0 0.0
    %1735 = vmatpush.msra.mxu0 0.0
    %1736 = vmatpush.msra.mxu0 0.0
    %1737 = vmatpush.msra.mxu0 0.0
    %1738 = vmatpush.msra.mxu0 0.0
    %1739 = vmatpush.msra.mxu0 0.0
    %1740 = vmatpush.msra.mxu0 0.0
    %1741 = vmatpush.msra.mxu0 0.0
    %1742 = vmatpush.msra.mxu0 0.0
    %1743 = vmatpush.msra.mxu0 %v45
    %1744 = vmatpush.msra.mxu0 %v44
    %1745 = vmatmul.f32.gmra.mxu0 %v1727
    %v1746 = vpop.f32.mrf.mxu0
    %v1747 = vadd.f32 0.0, %v1746
    %1748 = vdwg.mxu0
    %v1750 = vsel %vm69, %v1723, 0
    %1752 = vmatpush.msra.mxu0 0.0
    %1753 = vmatpush.msra.mxu0 0.0
    %1754 = vmatpush.msra.mxu0 0.0
    %1755 = vmatpush.msra.mxu0 0.0
    %1756 = vmatpush.msra.mxu0 0.0
    %1757 = vmatpush.msra.mxu0 0.0
    %1758 = vmatpush.msra.mxu0 0.0
    %1759 = vmatpush.msra.mxu0 0.0
    %1760 = vmatpush.msra.mxu0 0.0
    %1761 = vmatpush.msra.mxu0 0.0
    %1762 = vmatpush.msra.mxu0 0.0
    %1763 = vmatpush.msra.mxu0 0.0
    %1764 = vmatpush.msra.mxu0 0.0
    %1765 = vmatpush.msra.mxu0 0.0
    %1766 = vmatpush.msra.mxu0 %v43
    %1767 = vmatpush.msra.mxu0 %v42
    %1768 = vmatmul.f32.gmra.mxu0 %v1750
    %v1769 = vpop.f32.mrf.mxu0
    %v1770 = vadd.f32 %v1747, %v1769
    %1771 = vdwg.mxu0
    %v1772 = vadd.f32 %v1770, %v117
    %v1773 = vxor.u32 %v1772, 2147483648
    %v1774 = vmul.f32 %v1773, 1.442695
    %v1775 = vpow.pop %v1774
    %v1776 = vadd.f32 %v1775, 1.0
    %v1777 = vrcp.pop %v1776
    %v1778 = vmul.f32 %v1776, %v1777
    %v1779 = vsub.f32 1.0, %v1778
    %v1780 = vmul.f32 %v1777, %v1779
    %v1781 = vadd.f32 %v1777, %v1780
    %vm1782 = vweird.f32 %v1776
    %vm1783 = vweird.f32 %v1777
    %vm1784 = vmor %vm1782, %vm1783
    %v1785 = vsel %vm1784, %v1777, %v1781
    %v1786 = vand.u32 2147483647, %v1776
    %vm1787 = vcmp.eq.f32.partialorder %v1786, 8.507059e+37
    %v1788 = vand.u32 %v1776, 2147483648
    %v1789 = vor.u32 1.1754944e-38, %v1788
    %v1790 = vsel %vm1787, %v1789, %v1785
    %v1791 = vmul.f32 1.0, %v1790
    %v1792 = vtanh.pop %v1772
    %v1793 = vmul.f32 %v1791, %v1568
    %1795 = vrot.lane.b32.xlu0 %v1792, 80
    %v1796 = vpop.permute.xlu0 %1795
    %v1798 = vmul.f32 %v1791, %v1796
    %1800 = vrot.lane.b32.xlu0 %v1798, 16
    %v1801 = vpop.permute.xlu0 %1800
    %v1803 = vadd.f32 %v1793, %v1801
    %v1804 = vtanh.pop %v1803
    %1806 = vrot.lane.b32.xlu0 %v1804, 16
    %v1807 = vpop.permute.xlu0 %1806
    %v1809 = vmul.f32 %v1791, %v1807
    %1811 = vrot.lane.b32.xlu0 %v1568, 112
    %v1812 = vpop.permute.xlu0 %1811
    %v1814 = vsel %vm69, %v1812, %v1803
    %v1816 = vsel %vm161, %v1814, 0
    %1818 = vmatpush.msra.mxu0 0.0
    %1819 = vmatpush.msra.mxu0 0.0
    %1820 = vmatpush.msra.mxu0 0.0
    %1821 = vmatpush.msra.mxu0 0.0
    %1822 = vmatpush.msra.mxu0 0.0
    %1823 = vmatpush.msra.mxu0 0.0
    %1824 = vmatpush.msra.mxu0 0.0
    %1825 = vmatpush.msra.mxu0 0.0
    %1826 = vmatpush.msra.mxu0 0.0
    %1827 = vmatpush.msra.mxu0 0.0
    %1828 = vmatpush.msra.mxu0 0.0
    %1829 = vmatpush.msra.mxu0 0.0
    %1830 = vmatpush.msra.mxu0 %v50
    %1831 = vmatpush.msra.mxu0 %v49
    %1832 = vmatpush.msra.mxu0 %v48
    %1833 = vmatpush.msra.mxu0 %v47
    %1834 = vmatmul.f32.gmra.mxu0 %v1816
    %v1835 = vpop.f32.mrf.mxu0
    %v1836 = vadd.f32 %v159, %v1835
    %1837 = vdwg.mxu0
    %v1838 = vmax.f32 %v1836, 0.0
    %v1840 = vsel %vm69, %v1838, 0
    %1842 = vmatpush.msra.mxu0 0.0
    %1843 = vmatpush.msra.mxu0 0.0
    %1844 = vmatpush.msra.mxu0 0.0
    %1845 = vmatpush.msra.mxu0 0.0
    %1846 = vmatpush.msra.mxu0 0.0
    %1847 = vmatpush.msra.mxu0 0.0
    %1848 = vmatpush.msra.mxu0 0.0
    %1849 = vmatpush.msra.mxu0 0.0
    %1850 = vmatpush.msra.mxu0 0.0
    %1851 = vmatpush.msra.mxu0 0.0
    %1852 = vmatpush.msra.mxu0 0.0
    %1853 = vmatpush.msra.mxu0 0.0
    %1854 = vmatpush.msra.mxu0 0.0
    %1855 = vmatpush.msra.mxu0 0.0
    %1856 = vmatpush.msra.mxu0 %v53
    %1857 = vmatpush.msra.mxu0 %v52
    %1858 = vmatmul.f32.gmra.mxu0 %v1840
    %v1859 = vpop.f32.mrf.mxu0
    %v1860 = vadd.f32 %v187, %v1859
    %1861 = vdwg.mxu0
    %v1862 = vsel %vm212, %v1860, -inf
    %1863 = vmax.xlane.f32.xlu0 %v1862
    %v1864 = vpop.xlane.xlu0 %1863
    %v1865 = vsub.f32 %v1860, %v1864
    %v1866 = vmul.f32 %v1865, 1.442695
    %v1867 = vpow.pop %v1866
    %v1868 = vsel %vm212, %v1867, 0.0
    %1869 = vadd.xlane.f32.xlu0 %v1868
    %v1870 = vpop.xlane.xlu0 %1869
    %v1871 = vrcp.pop %v1870
    %v1872 = vmul.f32 %v1867, %v1871
    %v1873 = vmul.f32 %v1872, %v1814
    %1875 = vrot.lane.b32.xlu0 %v1721, 24
    %v1876 = vpop.permute.xlu0 %1875
    %v1878 = vsel %vm161, %v1873, %v1876
    %v1880 = vsel %vm229, %v1878, 0
    %1882 = vmatpush.msra.mxu0 0.0
    %1883 = vmatpush.msra.mxu0 0.0
    %1884 = vmatpush.msra.mxu0 0.0
    %1885 = vmatpush.msra.mxu0 0.0
    %1886 = vmatpush.msra.mxu0 0.0
    %1887 = vmatpush.msra.mxu0 0.0
    %1888 = vmatpush.msra.mxu0 0.0
    %1889 = vmatpush.msra.mxu0 0.0
    %1890 = vmatpush.msra.mxu0 0.0
    %1891 = vmatpush.msra.mxu0 0.0
    %1892 = vmatpush.msra.mxu0 0.0
    %1893 = vmatpush.msra.mxu0 %v59
    %1894 = vmatpush.msra.mxu0 %v58
    %1895 = vmatpush.msra.mxu0 %v57
    %1896 = vmatpush.msra.mxu0 %v56
    %1897 = vmatpush.msra.mxu0 %v55
    %1898 = vmatmul.f32.gmra.mxu0 %v1880
    %v1899 = vpop.f32.mrf.mxu0
    %v1900 = vadd.f32 %v227, %v1899
    %1901 = vdwg.mxu0
    %v1902 = vmax.f32 %v1900, 0.0
    %v1904 = vsel %vm257, %v1902, 0
    %1906 = vmatpush.msra.mxu0 0.0
    %1907 = vmatpush.msra.mxu0 0.0
    %1908 = vmatpush.msra.mxu0 0.0
    %1909 = vmatpush.msra.mxu0 0.0
    %1910 = vmatpush.msra.mxu0 0.0
    %1911 = vmatpush.msra.mxu0 0.0
    %1912 = vmatpush.msra.mxu0 0.0
    %1913 = vmatpush.msra.mxu0 0.0
    %1914 = vmatpush.msra.mxu0 0.0
    %1915 = vmatpush.msra.mxu0 0.0
    %1916 = vmatpush.msra.mxu0 %v66
    %1917 = vmatpush.msra.mxu0 %v65
    %1918 = vmatpush.msra.mxu0 %v64
    %1919 = vmatpush.msra.mxu0 %v63
    %1920 = vmatpush.msra.mxu0 %v62
    %1921 = vmatpush.msra.mxu0 %v61
    %1922 = vmatmul.f32.gmra.mxu0 %v1904
    %v1923 = vpop.f32.mrf.mxu0
    %v1924 = vadd.f32 %v255, %v1923
    %1925 = vdwg.mxu0
    %v1926 = vtanh.pop %v1924
    %v1927 = vxor.u32 %v1924, 2147483648
    %v1928 = vmul.f32 %v1927, 1.442695
    %v1929 = vpow.pop %v1928
    %v1930 = vadd.f32 %v1929, 1.0
    %v1931 = vrcp.pop %v1930
    %v1932 = vmul.f32 %v1930, %v1931
    %v1933 = vsub.f32 1.0, %v1932
    %v1934 = vmul.f32 %v1931, %v1933
    %v1935 = vadd.f32 %v1931, %v1934
    %vm1936 = vweird.f32 %v1930
    %vm1937 = vweird.f32 %v1931
    %vm1938 = vmor %vm1936, %vm1937
    %v1939 = vsel %vm1938, %v1931, %v1935
    %v1940 = vand.u32 2147483647, %v1930
    %vm1941 = vcmp.eq.f32.partialorder %v1940, 8.507059e+37
    %v1942 = vand.u32 %v1930, 2147483648
    %v1943 = vor.u32 1.1754944e-38, %v1942
    %v1944 = vsel %vm1941, %v1943, %v1939
    %v1945 = vmul.f32 1.0, %v1944
    %v1946 = vmul.f32 %v1945, %v1721
    %1948 = vrot.lane.b32.xlu0 %v1926, 16
    %v1949 = vpop.permute.xlu0 %1948
    %v1951 = vmul.f32 %v1945, %v1949
    %1953 = vrot.lane.b32.xlu0 %v1951, 120
    %v1954 = vpop.permute.xlu0 %1953
    %v1956 = vadd.f32 %v1946, %v1954
    %1958 = vrot.lane.b32.xlu0 %v1809, 96
    %v1959 = vpop.permute.xlu0 %1958
    %1962 = vrot.lane.b32.xlu0 %v1956, 8
    %v1963 = vpop.permute.xlu0 %1962
    %v1965 = vsel %vm69, %v1959, %v1963
    %vm1966 = vcmask 191488
    %1967 = vst.msk [vmem:[#allocation2] sm:$0xf] %vm1966, %v1965
    // Predicated region
    $region50: #{mfn_forward.1} parent=1 // pred_check
      _
    $region51: #{mfn_forward.1} parent=1 // pred_check_branch
      %1969 = sbr.rel (0) target = $region53
    $region52: #{mfn_forward.1} parent=1 // pred_region
      %1971 = vsyncadd [#allocation3], 0
      %s1973 = sshll.u32 [#allocation2], 4
      %s1974 = int_to_ptr.vmem [resolvable:$true] %s1973
      %s1975 = sshll.u32 %s12, 4
      %s1976 = int_to_ptr.hbm [resolvable:$true] %s1975
      %1978 = dma.vmem_to_hbm [thread:$0]  %s1974, 64, %s1976, [#allocation3]
    $region53: #{mfn_forward.1} parent=1 // pred_fallthru
      _
    // Predicated region
    $region54: #{mfn_forward.1} parent=1 // pred_check
      _
    $region55: #{mfn_forward.1} parent=1 // pred_check_branch
      %1980 = sbr.rel (0) target = $region57
    $region56: #{mfn_forward.1} parent=1 // pred_region
      %1982 = dma.done [#allocation3], 64
    $region57: #{mfn_forward.1} parent=1 // pred_fallthru
      _
    %1983 = vsyncpa [#allocation3], 1

</llo_original>
